<compile_context>
chip_gen: v7x
topology: tpu7x:2x2x1
jax: 0.10.0
libtpu: 0.0.40
codegen_flags: <defaults>
</compile_context>

<pallas_src>
import functools
import numpy as np
import jax
import jax.numpy as jnp
from jax import lax
from jax.experimental import pallas as pl
from jax.experimental.pallas import tpu as pltpu


# ------------------------------ fused kernel ------------------------------

def _bottleneck_kernel(x_ref, mask_ref, w1_ref, b1_ref, w2_ref, b2_ref,
                       w3_ref, b3_ref, o_ref, *, W):
    """One grid step = `block_n` whole images flattened to R = block_n*H*W pixel
    rows, channels on the lane axis.  All three convs + (folded) BN + ReLU +
    residual run inside one step; intermediates never touch HBM."""
    R = x_ref.shape[0]
    x = x_ref[...]                                                 # (R, Cin) bf16

    # ---- stage 1: 1x1 conv (BN scale pre-folded into w1) + bias + ReLU ----
    y1 = jnp.dot(x, w1_ref[...], preferred_element_type=jnp.float32)
    y1 = jnp.maximum(y1 + b1_ref[...], 0.0)                        # (R, C0) f32

    # ---- stage 2: 3x3 conv (stride 1, pad 1) as ONE K=9*C0 MXU matmul ----
    # Tap (dh, dw) of output row q lives at flat row q + (dh-1)*W + (dw-1).
    # Fetch it with an XLU sublane rotation (pltpu.roll) -- no misaligned row
    # slices -- zero the out-of-image positions with a precomputed {0,1} mask,
    # concatenate the 9 taps on the lane axis and let the MXU do the reduction.
    taps = []
    for j in range(9):
        dh, dw = j // 3, j % 3
        off = (dh - 1) * W + (dw - 1)
        if off == 0:
            taps.append(y1)                         # centre tap: always in-bounds
        else:
            rolled = pltpu.roll(y1, (-off) % R, 0)  # rolled[q] == y1[q + off]
            taps.append(rolled * mask_ref[j])       # (R,1) mask broadcast over C0
    t = jnp.concatenate(taps, axis=-1).astype(jnp.bfloat16)        # (R, 9*C0)
    y2 = jnp.dot(t, w2_ref[...], preferred_element_type=jnp.float32)
    y2 = jnp.maximum(y2 + b2_ref[...], 0.0)                        # (R, C1) f32

    # ---- stage 3: 1x1 conv + bias + residual add + ReLU ----
    y3 = jnp.dot(y2.astype(jnp.bfloat16), w3_ref[...],
                 preferred_element_type=jnp.float32)               # (R, C2) f32
    y3 = y3 + b3_ref[...] + x.astype(jnp.float32)
    o_ref[...] = jnp.maximum(y3, 0.0).astype(o_ref.dtype)


# ------------------------------ host helpers ------------------------------

def _tap_masks(H, W, block_n):
    """{0,1} validity masks for the 9 (dh,dw) taps of a padded 3x3 conv, per flat
    pixel row, tiled over the images packed into one grid step.  Precomputed on
    the host (no iota / div / mod inside the kernel); VMEM-resident (constant
    index_map).  Also guarantees pltpu.roll wrap-around never leaks across image
    boundaries inside a multi-image block."""
    h = np.arange(H * W) // W
    w = np.arange(H * W) % W
    m = np.empty((9, H * W), np.float32)
    for j in range(9):
        dh, dw = j // 3 - 1, j % 3 - 1
        m[j] = ((h + dh >= 0) & (h + dh < H) & (w + dw >= 0) & (w + dw < W))
    m = np.tile(m, (1, block_n))
    return jnp.asarray(m[:, :, None])                  # (9, block_n*H*W, 1) f32


def bottleneck_forward_nhwc(x_nhwc, params, *, block_n=1):
    """Fused Pallas forward of `Bottleneck` on channels-last input (N, H, W, Cin).

    Per-chip tuning:
      * block_n = images per grid step.  v5e/v6e (1 TensorCore): largest block_n
        that fits VMEM (fewer, bigger steps amortize the ~0.35us/step overhead).
        v7x (2 TensorCores): keep block_n small so the parallel (N/block_n,) grid
        has >=2 balanced steps per chip.
      * vmem_limit_bytes is derived from the per-step working set below.
    """
    N, H, W, Cin = x_nhwc.shape
    M = H * W
    assert N % block_n == 0, "block_n must divide the batch"
    # Sublane-aligned rotations: keep the flat pixel count a multiple of 8.
    # TODO(synk): pad M up to a multiple of 8 for odd spatial sizes (e.g. 7x7).
    assert M % 8 == 0, "H*W must be a multiple of 8"
    G = N // block_n
    R = block_n * M

    C0 = params["w1"].shape[1]
    C1 = params["w2"].shape[3]
    C2 = params["w3"].shape[1]
    assert C2 == Cin, "residual add (downsample=None) requires cfg[2] == inplanes"
    assert params["w2"].shape[:3] == (3, 3, C0), "conv2 must be 3x3 with padding=1"

    # Fold the BN scales into the conv weights in f32, THEN cast to bf16 for the
    # MXU (f32 accumulation in-kernel).  Only bias + ReLU remain in the epilogues.
    w1 = (params["w1"] * params["s1"]).astype(jnp.bfloat16)                 # (Cin, C0)
    w2 = (params["w2"] * params["s2"]).reshape(9 * C0, C1).astype(jnp.bfloat16)
    w3 = (params["w3"] * params["s3"]).astype(jnp.bfloat16)                 # (C1, C2)
    b1, b2, b3 = params["b1"], params["b2"], params["b3"]                   # (1,C) f32

    masks = _tap_masks(H, W, block_n)                                       # (9,R,1)

    # Activations travel HBM<->VMEM in bf16 (halves DMA bytes; MXU operands are
    # bf16 anyway).  No host-side spatial padding or halo duplication.
    x_flat = x_nhwc.reshape(G, R, Cin).astype(jnp.bfloat16)

    kernel = functools.partial(_bottleneck_kernel, W=W)
    const2 = lambda i: (0, 0)
    const3 = lambda i: (0, 0, 0)

    flops = 2 * N * M * (Cin * C0 + 9 * C0 * C1 + C1 * C2)
    bytes_accessed = (x_flat.size * 2 + N * M * C2 * 4
                      + (w1.size + w2.size + w3.size) * 2
                      + (b1.size + b2.size + b3.size + masks.size) * 4)

    # Per-step VMEM working set: double-buffered activation blocks + resident
    # weights/biases/masks + live intermediates (y1, 9 masked taps, tap matrix, y2).
    need = (2 * R * Cin * 2 + 2 * R * C2 * 4
            + R * (10 * C0 + C1) * 4 + R * 9 * C0 * 2
            + (w1.size + w2.size + w3.size) * 2
            + (b1.size + b2.size + b3.size + masks.size) * 4)
    vmem_limit = int(min(64 * 1024 * 1024, max(16 * 1024 * 1024, 2 * need)))

    out = pl.pallas_call(
        kernel,
        grid=(G,),
        in_specs=[
            pl.BlockSpec((None, R, Cin), lambda i: (i, 0, 0)),   # x (pipelined)
            # Constant-index inputs stay VMEM-resident across the whole grid.
            # TODO(synk): at production channel counts mark these
            # pipeline_mode=pl.Buffered(1) to drop their second buffer (v7x VMEM).
            pl.BlockSpec((9, R, 1), const3),                      # tap masks
            pl.BlockSpec((Cin, C0), const2),                      # w1 (BN folded)
            pl.BlockSpec((1, C0), const2),                        # b1
            pl.BlockSpec((9 * C0, C1), const2),                   # w2 (BN folded)
            pl.BlockSpec((1, C1), const2),                        # b2
            pl.BlockSpec((C1, C2), const2),                       # w3 (BN folded)
            pl.BlockSpec((1, C2), const2),                        # b3
        ],
        out_specs=pl.BlockSpec((None, R, C2), lambda i: (i, 0, 0)),
        out_shape=jax.ShapeDtypeStruct((G, R, C2), jnp.float32),
        compiler_params=pltpu.CompilerParams(
            dimension_semantics=("parallel",),        # v7x: shard steps over 2 TCs
            vmem_limit_bytes=vmem_limit),
        cost_estimate=pl.CostEstimate(flops=flops, transcendentals=0,
                                      bytes_accessed=bytes_accessed),
    )(x_flat, masks, w1, b1, w2, b2, w3, b3)

    return out.reshape(N, H, W, C2)


def bottleneck_forward(x_nchw, params, stride=1, block_n=1):
    """NCHW-boundary wrapper matching the PyTorch module.  NOTE: at model scope,
    keep activations NHWC (bf16) across the chain of residual blocks and do the
    NCHW<->NHWC transpose once outside -- it is only done here to match the spec."""
    if stride != 1:
        # TODO(synk): stride>1 / downsample path not implemented (the module is
        # exercised with downsample=None, where stride>1 is semantically invalid).
        raise NotImplementedError("only stride=1 with downsample=None is supported")
    # TODO(synk): `self.select` is used in forward() but never defined in
    # __init__; treated as identity.
    x = jnp.transpose(x_nchw, (0, 2, 3, 1))                       # NCHW -> NHWC
    out = bottleneck_forward_nhwc(x, params, block_n=block_n)
    return jnp.transpose(out, (0, 3, 1, 2))                       # NHWC -> NCHW


# ------------------------------ parameter init ------------------------------

def init_params(key, inplanes, cfg):
    """Deterministic synthetic parameters.  BatchNorm is inference-mode and
    represented as per-channel scale/bias: scale = gamma/sqrt(var+eps),
    bias = beta - mean*scale (the wrapper folds `scale` into the conv weights)."""
    conv_in = cfg[3]
    ks = jax.random.split(key, 15)

    def w(k, shape, fan_in):
        return (jax.random.normal(k, shape, jnp.float32) / np.sqrt(fan_in)).astype(jnp.float32)

    def bn(kg, kb, km, kv, c):
        gamma = 1.0 + 0.1 * jax.random.normal(kg, (c,), jnp.float32)
        beta = 0.1 * jax.random.normal(kb, (c,), jnp.float32)
        mean = 0.1 * jax.random.normal(km, (c,), jnp.float32)
        var = jax.nn.softplus(jax.random.normal(kv, (c,), jnp.float32)) + 0.5
        eps = 1e-5
        scale = gamma / jnp.sqrt(var + eps)
        bias = beta - mean * scale
        return scale.reshape(1, c), bias.reshape(1, c)

    params = {
        "w1": w(ks[0], (conv_in, cfg[0]), conv_in),          # 1x1: (Cin, C0)
        "w2": w(ks[1], (3, 3, cfg[0], cfg[1]), 9 * cfg[0]),  # 3x3: (3,3,C0,C1) HWIO
        "w3": w(ks[2], (cfg[1], cfg[2]), cfg[1]),            # 1x1: (C1, C2)
    }
    params["s1"], params["b1"] = bn(ks[3], ks[4], ks[5], ks[6], cfg[0])
    params["s2"], params["b2"] = bn(ks[7], ks[8], ks[9], ks[10], cfg[1])
    params["s3"], params["b3"] = bn(ks[11], ks[12], ks[13], ks[14], cfg[2])
    return params


# ------------------------------ plain-JAX reference ------------------------------

def reference_forward(x_nchw, params, stride=1):
    """Full-f32 (HIGHEST precision) reference matching the PyTorch module."""
    def conv1x1(x, w):  # w: (Cin, Cout) -> OIHW
        w4 = jnp.transpose(w, (1, 0)).reshape(w.shape[1], w.shape[0], 1, 1)
        return lax.conv_general_dilated(x, w4, (1, 1), 'VALID',
                                        dimension_numbers=('NCHW', 'OIHW', 'NCHW'),
                                        precision=lax.Precision.HIGHEST)

    def conv3x3(x, w, s):  # w: (3,3,Cin,Cout) HWIO -> OIHW
        w4 = jnp.transpose(w, (3, 2, 0, 1))
        return lax.conv_general_dilated(x, w4, (s, s), ((1, 1), (1, 1)),
                                        dimension_numbers=('NCHW', 'OIHW', 'NCHW'),
                                        precision=lax.Precision.HIGHEST)

    def bn(x, scale, bias):
        return x * scale.reshape(1, -1, 1, 1) + bias.reshape(1, -1, 1, 1)

    out = jax.nn.relu(bn(conv1x1(x_nchw, params["w1"]), params["s1"], params["b1"]))
    out = jax.nn.relu(bn(conv3x3(out, params["w2"], stride), params["s2"], params["b2"]))
    out = bn(conv1x1(out, params["w3"]), params["s3"], params["b3"])
    return jax.nn.relu(out + x_nchw)


# ----------------------------------- main -----------------------------------

if __name__ == "__main__":
    # Bottleneck(inplanes=32, cfg=[conv1_out, conv2_out, conv3_out, conv1_in] =
    # [16, 16, 32, 32], stride=1, downsample=None).  Residual add requires
    # cfg[2] == inplanes.
    N, C, H, W = 2, 32, 8, 8
    cfg = [16, 16, 32, 32]

    key = jax.random.PRNGKey(0)
    kx, kp = jax.random.split(key)
    x = jax.random.normal(kx, (N, C, H, W), jnp.float32)
    params = init_params(kp, C, cfg)

    # block_n=1 -> grid (2,): two pipelined, well-balanced steps (feeds both v7x TCs).
    fwd = jax.jit(functools.partial(bottleneck_forward, stride=1, block_n=1))
    out = jax.block_until_ready(fwd(x, params))
    assert out.shape == (N, cfg[2], H, W)
    assert bool(jnp.all(jnp.isfinite(out)))

    # Loose tolerance: bf16 MXU operands (incl. bf16 activation DMA / residual)
    # vs a pure-f32 HIGHEST-precision reference.
    ref = jax.block_until_ready(reference_forward(x, params, stride=1))
    np.testing.assert_allclose(np.asarray(out), np.asarray(ref), rtol=5e-2, atol=5e-2)

    print("KERNEL_OK")
</pallas_src>

<mosaic_0001>
module attributes {stable_mosaic.version = 11 : i64} {
  func.func @_bottleneck_kernel(%arg0: i32, %arg1: memref<1x64x32xbf16, #tpu.memory_space<vmem>>, %arg2: memref<9x64x1xf32, #tpu.memory_space<vmem>>, %arg3: memref<32x16xbf16, #tpu.memory_space<vmem>>, %arg4: memref<1x16xf32, #tpu.memory_space<vmem>>, %arg5: memref<144x16xbf16, #tpu.memory_space<vmem>>, %arg6: memref<1x16xf32, #tpu.memory_space<vmem>>, %arg7: memref<16x32xbf16, #tpu.memory_space<vmem>>, %arg8: memref<1x32xf32, #tpu.memory_space<vmem>>, %arg9: memref<1x64x32xf32, #tpu.memory_space<vmem>>) attributes {dimension_semantics = [#tpu.dimension_semantics<parallel>], iteration_bounds = array<i64: 2>, scalar_prefetch = 0 : i64, scratch_operands = 0 : i64, tpu.core_type = #tpu.core_type<tc>, window_params = [{transform_indices = @transform_0, window_bounds = array<i64: 1, 64, 32>}, {pipeline_mode = #tpu.pipeline_mode<synchronous>, transform_indices = @transform_1, window_bounds = array<i64: 9, 64, 1>}, {pipeline_mode = #tpu.pipeline_mode<synchronous>, transform_indices = @transform_2, window_bounds = array<i64: 32, 16>}, {pipeline_mode = #tpu.pipeline_mode<synchronous>, transform_indices = @transform_3, window_bounds = array<i64: 1, 16>}, {pipeline_mode = #tpu.pipeline_mode<synchronous>, transform_indices = @transform_4, window_bounds = array<i64: 144, 16>}, {pipeline_mode = #tpu.pipeline_mode<synchronous>, transform_indices = @transform_5, window_bounds = array<i64: 1, 16>}, {pipeline_mode = #tpu.pipeline_mode<synchronous>, transform_indices = @transform_6, window_bounds = array<i64: 16, 32>}, {pipeline_mode = #tpu.pipeline_mode<synchronous>, transform_indices = @transform_7, window_bounds = array<i64: 1, 32>}, {transform_indices = @transform_8, window_bounds = array<i64: 1, 64, 32>}]} {
    %c0 = arith.constant 0 : index
    %c0_0 = arith.constant 0 : index
    %c0_1 = arith.constant 0 : index
    %0 = vector.load %arg1[%c0, %c0_0, %c0_1] : memref<1x64x32xbf16, #tpu.memory_space<vmem>>, vector<1x64x32xbf16>
    %1 = vector.shape_cast %0 : vector<1x64x32xbf16> to vector<64x32xbf16>
    %c0_2 = arith.constant 0 : index
    %c0_3 = arith.constant 0 : index
    %2 = vector.load %arg3[%c0_2, %c0_3] : memref<32x16xbf16, #tpu.memory_space<vmem>>, vector<32x16xbf16>
    %cst = arith.constant dense<0.000000e+00> : vector<64x16xf32>
    %3 = tpu.matmul %1, %2, %cst {dimension_numbers = #tpu.dot_dimension_numbers<[1], [0], [0], [1], [0, 0, 1, 1], [], []>} : vector<64x32xbf16>, vector<32x16xbf16>, vector<64x16xf32> -> vector<64x16xf32>
    %c0_4 = arith.constant 0 : index
    %c0_5 = arith.constant 0 : index
    %4 = vector.load %arg4[%c0_4, %c0_5] : memref<1x16xf32, #tpu.memory_space<vmem>>, vector<1x16xf32>
    %5 = vector.broadcast %4 : vector<1x16xf32> to vector<64x16xf32>
    %6 = arith.addf %3, %5 : vector<64x16xf32>
    %cst_6 = arith.constant 0.000000e+00 : f32
    %7 = vector.broadcast %cst_6 : f32 to vector<64x16xf32>
    %8 = arith.maximumf %6, %7 : vector<64x16xf32>
    %c9_i32 = arith.constant 9 : i32
    %9 = tpu.dynamic_rotate %8 by %c9_i32 dim 0 : vector<64x16xf32>, i32 -> vector<64x16xf32>
    %c0_7 = arith.constant 0 : index
    %c0_8 = arith.constant 0 : index
    %c0_9 = arith.constant 0 : index
    %10 = vector.load %arg2[%c0_7, %c0_8, %c0_9] : memref<9x64x1xf32, #tpu.memory_space<vmem>>, vector<1x64x1xf32>
    %11 = vector.shape_cast %10 : vector<1x64x1xf32> to vector<64x1xf32>
    %12 = vector.broadcast %11 : vector<64x1xf32> to vector<64x16xf32>
    %13 = arith.mulf %9, %12 : vector<64x16xf32>
    %c8_i32 = arith.constant 8 : i32
    %14 = tpu.dynamic_rotate %8 by %c8_i32 dim 0 : vector<64x16xf32>, i32 -> vector<64x16xf32>
    %c1 = arith.constant 1 : index
    %c0_10 = arith.constant 0 : index
    %c0_11 = arith.constant 0 : index
    %15 = vector.load %arg2[%c1, %c0_10, %c0_11] : memref<9x64x1xf32, #tpu.memory_space<vmem>>, vector<1x64x1xf32>
    %16 = vector.shape_cast %15 : vector<1x64x1xf32> to vector<64x1xf32>
    %17 = vector.broadcast %16 : vector<64x1xf32> to vector<64x16xf32>
    %18 = arith.mulf %14, %17 : vector<64x16xf32>
    %c7_i32 = arith.constant 7 : i32
    %19 = tpu.dynamic_rotate %8 by %c7_i32 dim 0 : vector<64x16xf32>, i32 -> vector<64x16xf32>
    %c2 = arith.constant 2 : index
    %c0_12 = arith.constant 0 : index
    %c0_13 = arith.constant 0 : index
    %20 = vector.load %arg2[%c2, %c0_12, %c0_13] : memref<9x64x1xf32, #tpu.memory_space<vmem>>, vector<1x64x1xf32>
    %21 = vector.shape_cast %20 : vector<1x64x1xf32> to vector<64x1xf32>
    %22 = vector.broadcast %21 : vector<64x1xf32> to vector<64x16xf32>
    %23 = arith.mulf %19, %22 : vector<64x16xf32>
    %c1_i32 = arith.constant 1 : i32
    %24 = tpu.dynamic_rotate %8 by %c1_i32 dim 0 : vector<64x16xf32>, i32 -> vector<64x16xf32>
    %c3 = arith.constant 3 : index
    %c0_14 = arith.constant 0 : index
    %c0_15 = arith.constant 0 : index
    %25 = vector.load %arg2[%c3, %c0_14, %c0_15] : memref<9x64x1xf32, #tpu.memory_space<vmem>>, vector<1x64x1xf32>
    %26 = vector.shape_cast %25 : vector<1x64x1xf32> to vector<64x1xf32>
    %27 = vector.broadcast %26 : vector<64x1xf32> to vector<64x16xf32>
    %28 = arith.mulf %24, %27 : vector<64x16xf32>
    %c63_i32 = arith.constant 63 : i32
    %29 = tpu.dynamic_rotate %8 by %c63_i32 dim 0 : vector<64x16xf32>, i32 -> vector<64x16xf32>
    %c5 = arith.constant 5 : index
    %c0_16 = arith.constant 0 : index
    %c0_17 = arith.constant 0 : index
    %30 = vector.load %arg2[%c5, %c0_16, %c0_17] : memref<9x64x1xf32, #tpu.memory_space<vmem>>, vector<1x64x1xf32>
    %31 = vector.shape_cast %30 : vector<1x64x1xf32> to vector<64x1xf32>
    %32 = vector.broadcast %31 : vector<64x1xf32> to vector<64x16xf32>
    %33 = arith.mulf %29, %32 : vector<64x16xf32>
    %c57_i32 = arith.constant 57 : i32
    %34 = tpu.dynamic_rotate %8 by %c57_i32 dim 0 : vector<64x16xf32>, i32 -> vector<64x16xf32>
    %c6 = arith.constant 6 : index
    %c0_18 = arith.constant 0 : index
    %c0_19 = arith.constant 0 : index
    %35 = vector.load %arg2[%c6, %c0_18, %c0_19] : memref<9x64x1xf32, #tpu.memory_space<vmem>>, vector<1x64x1xf32>
    %36 = vector.shape_cast %35 : vector<1x64x1xf32> to vector<64x1xf32>
    %37 = vector.broadcast %36 : vector<64x1xf32> to vector<64x16xf32>
    %38 = arith.mulf %34, %37 : vector<64x16xf32>
    %c56_i32 = arith.constant 56 : i32
    %39 = tpu.dynamic_rotate %8 by %c56_i32 dim 0 : vector<64x16xf32>, i32 -> vector<64x16xf32>
    %c7 = arith.constant 7 : index
    %c0_20 = arith.constant 0 : index
    %c0_21 = arith.constant 0 : index
    %40 = vector.load %arg2[%c7, %c0_20, %c0_21] : memref<9x64x1xf32, #tpu.memory_space<vmem>>, vector<1x64x1xf32>
    %41 = vector.shape_cast %40 : vector<1x64x1xf32> to vector<64x1xf32>
    %42 = vector.broadcast %41 : vector<64x1xf32> to vector<64x16xf32>
    %43 = arith.mulf %39, %42 : vector<64x16xf32>
    %c55_i32 = arith.constant 55 : i32
    %44 = tpu.dynamic_rotate %8 by %c55_i32 dim 0 : vector<64x16xf32>, i32 -> vector<64x16xf32>
    %c8 = arith.constant 8 : index
    %c0_22 = arith.constant 0 : index
    %c0_23 = arith.constant 0 : index
    %45 = vector.load %arg2[%c8, %c0_22, %c0_23] : memref<9x64x1xf32, #tpu.memory_space<vmem>>, vector<1x64x1xf32>
    %46 = vector.shape_cast %45 : vector<1x64x1xf32> to vector<64x1xf32>
    %47 = vector.broadcast %46 : vector<64x1xf32> to vector<64x16xf32>
    %48 = arith.mulf %44, %47 : vector<64x16xf32>
    %49 = tpu.concatenate %13, %18, %23, %28, %8, %33, %38, %43, %48 in 1 : vector<64x16xf32>, vector<64x16xf32>, vector<64x16xf32>, vector<64x16xf32>, vector<64x16xf32>, vector<64x16xf32>, vector<64x16xf32>, vector<64x16xf32>, vector<64x16xf32> -> vector<64x144xf32>
    %50 = arith.truncf %49 : vector<64x144xf32> to vector<64x144xbf16>
    %c0_24 = arith.constant 0 : index
    %c0_25 = arith.constant 0 : index
    %51 = vector.load %arg5[%c0_24, %c0_25] : memref<144x16xbf16, #tpu.memory_space<vmem>>, vector<144x16xbf16>
    %cst_26 = arith.constant dense<0.000000e+00> : vector<64x16xf32>
    %52 = tpu.matmul %50, %51, %cst_26 {dimension_numbers = #tpu.dot_dimension_numbers<[1], [0], [0], [1], [0, 0, 1, 1], [], []>} : vector<64x144xbf16>, vector<144x16xbf16>, vector<64x16xf32> -> vector<64x16xf32>
    %c0_27 = arith.constant 0 : index
    %c0_28 = arith.constant 0 : index
    %53 = vector.load %arg6[%c0_27, %c0_28] : memref<1x16xf32, #tpu.memory_space<vmem>>, vector<1x16xf32>
    %54 = vector.broadcast %53 : vector<1x16xf32> to vector<64x16xf32>
    %55 = arith.addf %52, %54 : vector<64x16xf32>
    %cst_29 = arith.constant 0.000000e+00 : f32
    %56 = vector.broadcast %cst_29 : f32 to vector<64x16xf32>
    %57 = arith.maximumf %55, %56 : vector<64x16xf32>
    %58 = arith.truncf %57 : vector<64x16xf32> to vector<64x16xbf16>
    %c0_30 = arith.constant 0 : index
    %c0_31 = arith.constant 0 : index
    %59 = vector.load %arg7[%c0_30, %c0_31] : memref<16x32xbf16, #tpu.memory_space<vmem>>, vector<16x32xbf16>
    %cst_32 = arith.constant dense<0.000000e+00> : vector<64x32xf32>
    %60 = tpu.matmul %58, %59, %cst_32 {dimension_numbers = #tpu.dot_dimension_numbers<[1], [0], [0], [1], [0, 0, 1, 1], [], []>} : vector<64x16xbf16>, vector<16x32xbf16>, vector<64x32xf32> -> vector<64x32xf32>
    %c0_33 = arith.constant 0 : index
    %c0_34 = arith.constant 0 : index
    %61 = vector.load %arg8[%c0_33, %c0_34] : memref<1x32xf32, #tpu.memory_space<vmem>>, vector<1x32xf32>
    %62 = vector.broadcast %61 : vector<1x32xf32> to vector<64x32xf32>
    %63 = arith.addf %60, %62 : vector<64x32xf32>
    %64 = arith.extf %1 : vector<64x32xbf16> to vector<64x32xf32>
    %65 = arith.addf %63, %64 : vector<64x32xf32>
    %cst_35 = arith.constant 0.000000e+00 : f32
    %66 = vector.broadcast %cst_35 : f32 to vector<64x32xf32>
    %67 = arith.maximumf %65, %66 : vector<64x32xf32>
    %c0_36 = arith.constant 0 : index
    %c0_37 = arith.constant 0 : index
    %c0_38 = arith.constant 0 : index
    %68 = vector.load %arg9[%c0_36, %c0_37, %c0_38] : memref<1x64x32xf32, #tpu.memory_space<vmem>>, vector<1x64x32xf32>
    %69 = vector.shape_cast %68 : vector<1x64x32xf32> to vector<64x32xf32>
    %70 = vector.shape_cast %67 : vector<64x32xf32> to vector<1x64x32xf32>
    tpu.vector_store %arg9[%c0_36, %c0_37, %c0_38], %70 {strides = array<i32>} : memref<1x64x32xf32, #tpu.memory_space<vmem>>, vector<1x64x32xf32>,
    return
  }
  func.func @transform_0(%arg0: i32) -> (i32, i32, i32) {
    %c0_i32 = arith.constant 0 : i32
    %c0_i32_0 = arith.constant 0 : i32
    %c0_i32_1 = arith.constant 0 : i32
    return %arg0, %c0_i32, %c0_i32_0 : i32, i32, i32
  }
  func.func @transform_1(%arg0: i32) -> (i32, i32, i32) {
    %c0_i32 = arith.constant 0 : i32
    %c0_i32_0 = arith.constant 0 : i32
    %c0_i32_1 = arith.constant 0 : i32
    %c0_i32_2 = arith.constant 0 : i32
    return %c0_i32, %c0_i32_0, %c0_i32_1 : i32, i32, i32
  }
  func.func @transform_2(%arg0: i32) -> (i32, i32) {
    %c0_i32 = arith.constant 0 : i32
    %c0_i32_0 = arith.constant 0 : i32
    %c0_i32_1 = arith.constant 0 : i32
    return %c0_i32, %c0_i32_0 : i32, i32
  }
  func.func @transform_3(%arg0: i32) -> (i32, i32) {
    %c0_i32 = arith.constant 0 : i32
    %c0_i32_0 = arith.constant 0 : i32
    %c0_i32_1 = arith.constant 0 : i32
    return %c0_i32, %c0_i32_0 : i32, i32
  }
  func.func @transform_4(%arg0: i32) -> (i32, i32) {
    %c0_i32 = arith.constant 0 : i32
    %c0_i32_0 = arith.constant 0 : i32
    %c0_i32_1 = arith.constant 0 : i32
    return %c0_i32, %c0_i32_0 : i32, i32
  }
  func.func @transform_5(%arg0: i32) -> (i32, i32) {
    %c0_i32 = arith.constant 0 : i32
    %c0_i32_0 = arith.constant 0 : i32
    %c0_i32_1 = arith.constant 0 : i32
    return %c0_i32, %c0_i32_0 : i32, i32
  }
  func.func @transform_6(%arg0: i32) -> (i32, i32) {
    %c0_i32 = arith.constant 0 : i32
    %c0_i32_0 = arith.constant 0 : i32
    %c0_i32_1 = arith.constant 0 : i32
    return %c0_i32, %c0_i32_0 : i32, i32
  }
  func.func @transform_7(%arg0: i32) -> (i32, i32) {
    %c0_i32 = arith.constant 0 : i32
    %c0_i32_0 = arith.constant 0 : i32
    %c0_i32_1 = arith.constant 0 : i32
    return %c0_i32, %c0_i32_0 : i32, i32
  }
  func.func @transform_8(%arg0: i32) -> (i32, i32, i32) {
    %c0_i32 = arith.constant 0 : i32
    %c0_i32_0 = arith.constant 0 : i32
    %c0_i32_1 = arith.constant 0 : i32
    return %arg0, %c0_i32, %c0_i32_0 : i32, i32, i32
  }
}

</mosaic_0001>

<llo_original>
// kernel: bottleneck_forward.1
$region0: #{bottleneck_forward.1}
  #allocation0 [shape = 'u32[]', space=smem, size = 0x4, offset = 0x4, fixed_abs, tag = 'smem constant byte address 0x4 - core index']
  #allocation1 [shape = 'u32[144,128]{1,0:T(1,128)}', space=vmem, size = 0x12000, scoped, tag = 'internal scratch']
  %s0 = inlined_call_operand.vmem [shape: bf16[2,64,32], index: 0, kind: input, shape index: {}]
  %s1 = inlined_call_operand.vmem [shape: f32[9,64,1], index: 1, kind: input, shape index: {}]
  %s2 = inlined_call_operand.vmem [shape: bf16[32,16], index: 2, kind: input, shape index: {}]
  %s3 = inlined_call_operand.vmem [shape: f32[1,16], index: 3, kind: input, shape index: {}]
  %s4 = inlined_call_operand.vmem [shape: bf16[144,16], index: 4, kind: input, shape index: {}]
  %s5 = inlined_call_operand.vmem [shape: f32[1,16], index: 5, kind: input, shape index: {}]
  %s6 = inlined_call_operand.vmem [shape: bf16[16,32], index: 6, kind: input, shape index: {}]
  %s7 = inlined_call_operand.vmem [shape: f32[1,32], index: 7, kind: input, shape index: {}]
  %s8 = inlined_call_operand.hbm [shape: f32[2,64,32], index: 8, kind: output, shape index: {}]
  %s9 = sld [smem:[#allocation0]]
  $region65: #{bottleneck_forward.1} parent=0
    _
  %s11 = ssub.s32 1, %s9
  %s12 = scalar_select 0, %s11, %s9
  $region1: #{bottleneck_forward.1} parent=0
    #allocation2 [shape = 'u8[65536]{0}', space=vmem, size = 0x10000, scoped, tag = 'output window, operand 0']
    #allocation3 [shape = 's32[2]{0}', space=sflag, size = 0x8, scoped, tag = 'scoped memory for bottleneck_forward.1']
    %13 = vsyncpa [#allocation3], 0
    %s14 = scalar_lea.sflag [#allocation3], 1
    %15 = vsyncpa %s14, 0
    loop: start=0, step=1, limit=4
    $region2: #{bottleneck_forward.1} parent=1 // loop_pre_header
      _
    $region3: #{bottleneck_forward.1} parent=1 // loop_header
      %s17 = sphi 0, %s21
      %p18 = scmp.ge.s32.totalorder %s17, 4
      %s27 = sphi 0, %s29
      %s30 = sphi 0, %s27
      %s31 = sphi 0, %s30
      %s47 = sphi 0, %s31
      %s51 = sphi 0, %s51
      %s53 = sphi 0, %s51
      %s54 = sphi 0, %s53
      %s68 = sphi 0, %s54
      %s72 = sphi 0, %s72
      %s74 = sphi 0, %s72
      %s75 = sphi 0, %s74
      %s89 = sphi 0, %s75
      %s93 = sphi 0, %s93
      %s95 = sphi 0, %s93
      %s96 = sphi 0, %s95
      %s110 = sphi 0, %s96
      %s114 = sphi 0, %s114
      %s116 = sphi 0, %s114
      %s117 = sphi 0, %s116
      %s131 = sphi 0, %s117
      %s135 = sphi 0, %s135
      %s137 = sphi 0, %s135
      %s138 = sphi 0, %s137
      %s152 = sphi 0, %s138
      %s156 = sphi 0, %s156
      %s158 = sphi 0, %s156
      %s159 = sphi 0, %s158
      %s173 = sphi 0, %s159
      %s177 = sphi 0, %s177
      %s179 = sphi 0, %s177
      %s180 = sphi 0, %s179
      %s194 = sphi 0, %s180
      %s200 = sphi 0, %s202
      %s203 = sphi 0, %s200
      %s204 = sphi 0, %s203
      %s220 = sphi 0, %s204
    $region4: #{bottleneck_forward.1} parent=1 // loop_header_branch
      %20 = sbr.rel (%p18) target = $region8
    $region5: #{bottleneck_forward.1} parent=1 // loop_body
      %s22 = ssub.s32 %s17, 1
      %s23 = ssub.s32 %s17, 2
      %s24 = sadd.s32 %s17, 1
      %s25 = ssub.s32 %s17, %s24
      %p26 = scmp.eq.s32.totalorder %s25, 0
      %s28 = sadd.s32 %s27, 1
      %s29 = scalar_select %p26, %s27, %s28
      %p32 = pneg %p26
      %p33 = scmp.eq.s32.totalorder %s17, 1
      %p34 = por %p32, %p33
      %p35 = scmp.ne.s32.totalorder %s27, %s30
      %p36 = scmp.eq.s32.totalorder %s17, 0
      %p37 = por %p35, %p36
      %p38 = scmp.ne.s32.totalorder %s27, %s30
      %p39 = scmp.eq.s32.totalorder %s22, 1
      %p40 = por %p38, %p39
      %p41 = scmp.ne.s32.totalorder %s30, %s31
      %p42 = scmp.eq.s32.totalorder %s22, 0
      %p43 = por %p41, %p42
      %p44 = scmp.ne.s32.totalorder %s30, %s31
      %p45 = scmp.eq.s32.totalorder %s23, 1
      %p46 = por %p44, %p45
      %p48 = scmp.ne.s32.totalorder %s31, %s47
      %p49 = scmp.eq.s32.totalorder %s23, 0
      %p50 = por %p48, %p49
      %s52 = sadd.s32 %s51, 1
      %p55 = scmp.eq.s32.totalorder %s17, 1
      %p56 = scmp.ne.s32.totalorder %s51, %s53
      %p57 = scmp.eq.s32.totalorder %s17, 0
      %p58 = por %p56, %p57
      %p59 = scmp.ne.s32.totalorder %s51, %s53
      %p60 = scmp.eq.s32.totalorder %s22, 1
      %p61 = por %p59, %p60
      %p62 = scmp.ne.s32.totalorder %s53, %s54
      %p63 = scmp.eq.s32.totalorder %s22, 0
      %p64 = por %p62, %p63
      %p65 = scmp.ne.s32.totalorder %s53, %s54
      %p66 = scmp.eq.s32.totalorder %s23, 1
      %p67 = por %p65, %p66
      %p69 = scmp.ne.s32.totalorder %s54, %s68
      %p70 = scmp.eq.s32.totalorder %s23, 0
      %p71 = por %p69, %p70
      %s73 = sadd.s32 %s72, 1
      %p76 = scmp.eq.s32.totalorder %s17, 1
      %p77 = scmp.ne.s32.totalorder %s72, %s74
      %p78 = scmp.eq.s32.totalorder %s17, 0
      %p79 = por %p77, %p78
      %p80 = scmp.ne.s32.totalorder %s72, %s74
      %p81 = scmp.eq.s32.totalorder %s22, 1
      %p82 = por %p80, %p81
      %p83 = scmp.ne.s32.totalorder %s74, %s75
      %p84 = scmp.eq.s32.totalorder %s22, 0
      %p85 = por %p83, %p84
      %p86 = scmp.ne.s32.totalorder %s74, %s75
      %p87 = scmp.eq.s32.totalorder %s23, 1
      %p88 = por %p86, %p87
      %p90 = scmp.ne.s32.totalorder %s75, %s89
      %p91 = scmp.eq.s32.totalorder %s23, 0
      %p92 = por %p90, %p91
      %s94 = sadd.s32 %s93, 1
      %p97 = scmp.eq.s32.totalorder %s17, 1
      %p98 = scmp.ne.s32.totalorder %s93, %s95
      %p99 = scmp.eq.s32.totalorder %s17, 0
      %p100 = por %p98, %p99
      %p101 = scmp.ne.s32.totalorder %s93, %s95
      %p102 = scmp.eq.s32.totalorder %s22, 1
      %p103 = por %p101, %p102
      %p104 = scmp.ne.s32.totalorder %s95, %s96
      %p105 = scmp.eq.s32.totalorder %s22, 0
      %p106 = por %p104, %p105
      %p107 = scmp.ne.s32.totalorder %s95, %s96
      %p108 = scmp.eq.s32.totalorder %s23, 1
      %p109 = por %p107, %p108
      %p111 = scmp.ne.s32.totalorder %s96, %s110
      %p112 = scmp.eq.s32.totalorder %s23, 0
      %p113 = por %p111, %p112
      %s115 = sadd.s32 %s114, 1
      %p118 = scmp.eq.s32.totalorder %s17, 1
      %p119 = scmp.ne.s32.totalorder %s114, %s116
      %p120 = scmp.eq.s32.totalorder %s17, 0
      %p121 = por %p119, %p120
      %p122 = scmp.ne.s32.totalorder %s114, %s116
      %p123 = scmp.eq.s32.totalorder %s22, 1
      %p124 = por %p122, %p123
      %p125 = scmp.ne.s32.totalorder %s116, %s117
      %p126 = scmp.eq.s32.totalorder %s22, 0
      %p127 = por %p125, %p126
      %p128 = scmp.ne.s32.totalorder %s116, %s117
      %p129 = scmp.eq.s32.totalorder %s23, 1
      %p130 = por %p128, %p129
      %p132 = scmp.ne.s32.totalorder %s117, %s131
      %p133 = scmp.eq.s32.totalorder %s23, 0
      %p134 = por %p132, %p133
      %s136 = sadd.s32 %s135, 1
      %p139 = scmp.eq.s32.totalorder %s17, 1
      %p140 = scmp.ne.s32.totalorder %s135, %s137
      %p141 = scmp.eq.s32.totalorder %s17, 0
      %p142 = por %p140, %p141
      %p143 = scmp.ne.s32.totalorder %s135, %s137
      %p144 = scmp.eq.s32.totalorder %s22, 1
      %p145 = por %p143, %p144
      %p146 = scmp.ne.s32.totalorder %s137, %s138
      %p147 = scmp.eq.s32.totalorder %s22, 0
      %p148 = por %p146, %p147
      %p149 = scmp.ne.s32.totalorder %s137, %s138
      %p150 = scmp.eq.s32.totalorder %s23, 1
      %p151 = por %p149, %p150
      %p153 = scmp.ne.s32.totalorder %s138, %s152
      %p154 = scmp.eq.s32.totalorder %s23, 0
      %p155 = por %p153, %p154
      %s157 = sadd.s32 %s156, 1
      %p160 = scmp.eq.s32.totalorder %s17, 1
      %p161 = scmp.ne.s32.totalorder %s156, %s158
      %p162 = scmp.eq.s32.totalorder %s17, 0
      %p163 = por %p161, %p162
      %p164 = scmp.ne.s32.totalorder %s156, %s158
      %p165 = scmp.eq.s32.totalorder %s22, 1
      %p166 = por %p164, %p165
      %p167 = scmp.ne.s32.totalorder %s158, %s159
      %p168 = scmp.eq.s32.totalorder %s22, 0
      %p169 = por %p167, %p168
      %p170 = scmp.ne.s32.totalorder %s158, %s159
      %p171 = scmp.eq.s32.totalorder %s23, 1
      %p172 = por %p170, %p171
      %p174 = scmp.ne.s32.totalorder %s159, %s173
      %p175 = scmp.eq.s32.totalorder %s23, 0
      %p176 = por %p174, %p175
      %s178 = sadd.s32 %s177, 1
      %p181 = scmp.eq.s32.totalorder %s17, 1
      %p182 = scmp.ne.s32.totalorder %s177, %s179
      %p183 = scmp.eq.s32.totalorder %s17, 0
      %p184 = por %p182, %p183
      %p185 = scmp.ne.s32.totalorder %s177, %s179
      %p186 = scmp.eq.s32.totalorder %s22, 1
      %p187 = por %p185, %p186
      %p188 = scmp.ne.s32.totalorder %s179, %s180
      %p189 = scmp.eq.s32.totalorder %s22, 0
      %p190 = por %p188, %p189
      %p191 = scmp.ne.s32.totalorder %s179, %s180
      %p192 = scmp.eq.s32.totalorder %s23, 1
      %p193 = por %p191, %p192
      %p195 = scmp.ne.s32.totalorder %s180, %s194
      %p196 = scmp.eq.s32.totalorder %s23, 0
      %p197 = por %p195, %p196
      %s198 = ssub.s32 %s17, %s24
      %p199 = scmp.eq.s32.totalorder %s198, 0
      %s201 = sadd.s32 %s200, 1
      %s202 = scalar_select %p199, %s200, %s201
      %p205 = pneg %p199
      %p206 = scmp.eq.s32.totalorder %s17, 1
      %p207 = por %p205, %p206
      %p208 = scmp.ne.s32.totalorder %s200, %s203
      %p209 = scmp.eq.s32.totalorder %s17, 0
      %p210 = por %p208, %p209
      %p211 = scmp.ne.s32.totalorder %s200, %s203
      %p212 = scmp.eq.s32.totalorder %s22, 1
      %p213 = por %p211, %p212
      %p214 = scmp.ne.s32.totalorder %s203, %s204
      %p215 = scmp.eq.s32.totalorder %s22, 0
      %p216 = por %p214, %p215
      %p217 = scmp.ne.s32.totalorder %s203, %s204
      %p218 = scmp.eq.s32.totalorder %s23, 1
      %p219 = por %p217, %p218
      %p221 = scmp.ne.s32.totalorder %s204, %s220
      %p222 = scmp.eq.s32.totalorder %s23, 0
      %p223 = por %p221, %p222
      %p224 = scmp.le.s32.totalorder 1, %s17
      %p225 = scmp.lt.s32.totalorder %s17, 3
      %p226 = pnand %p224, %p225
      %p227 = pneg %p226
      // Predicated region
      $region9: #{bottleneck_forward.1} parent=5 // pred_check
        _
      $region10: #{bottleneck_forward.1} parent=5 // pred_check_branch
        %229 = sbr.rel (%p226) target = $region12
      $region11: #{bottleneck_forward.1} parent=5 // pred_region
        %s230 = ssub.s32 %s17, 1
        // Predicated region
        $region13: #{bottleneck_forward.1} parent=11 // pred_check
          %p231 = pneg %p64
        $region14: #{bottleneck_forward.1} parent=11 // pred_check_branch
          %233 = sbr.rel (%p231) target = $region16
        $region15: #{bottleneck_forward.1} parent=11 // pred_region
          _
        $region16: #{bottleneck_forward.1} parent=11 // pred_fallthru
          _
        // Predicated region
        $region17: #{bottleneck_forward.1} parent=11 // pred_check
          %p234 = pneg %p85
        $region18: #{bottleneck_forward.1} parent=11 // pred_check_branch
          %236 = sbr.rel (%p234) target = $region20
        $region19: #{bottleneck_forward.1} parent=11 // pred_region
          _
        $region20: #{bottleneck_forward.1} parent=11 // pred_fallthru
          _
        // Predicated region
        $region21: #{bottleneck_forward.1} parent=11 // pred_check
          %p237 = pneg %p106
        $region22: #{bottleneck_forward.1} parent=11 // pred_check_branch
          %239 = sbr.rel (%p237) target = $region24
        $region23: #{bottleneck_forward.1} parent=11 // pred_region
          _
        $region24: #{bottleneck_forward.1} parent=11 // pred_fallthru
          _
        // Predicated region
        $region25: #{bottleneck_forward.1} parent=11 // pred_check
          %p240 = pneg %p127
        $region26: #{bottleneck_forward.1} parent=11 // pred_check_branch
          %242 = sbr.rel (%p240) target = $region28
        $region27: #{bottleneck_forward.1} parent=11 // pred_region
          _
        $region28: #{bottleneck_forward.1} parent=11 // pred_fallthru
          _
        // Predicated region
        $region29: #{bottleneck_forward.1} parent=11 // pred_check
          %p243 = pneg %p148
        $region30: #{bottleneck_forward.1} parent=11 // pred_check_branch
          %245 = sbr.rel (%p243) target = $region32
        $region31: #{bottleneck_forward.1} parent=11 // pred_region
          _
        $region32: #{bottleneck_forward.1} parent=11 // pred_fallthru
          _
        // Predicated region
        $region33: #{bottleneck_forward.1} parent=11 // pred_check
          %p246 = pneg %p169
        $region34: #{bottleneck_forward.1} parent=11 // pred_check_branch
          %248 = sbr.rel (%p246) target = $region36
        $region35: #{bottleneck_forward.1} parent=11 // pred_region
          _
        $region36: #{bottleneck_forward.1} parent=11 // pred_fallthru
          _
        // Predicated region
        $region37: #{bottleneck_forward.1} parent=11 // pred_check
          %p249 = pneg %p190
        $region38: #{bottleneck_forward.1} parent=11 // pred_check_branch
          %251 = sbr.rel (%p249) target = $region40
        $region39: #{bottleneck_forward.1} parent=11 // pred_region
          _
        $region40: #{bottleneck_forward.1} parent=11 // pred_fallthru
          _
      $region12: #{bottleneck_forward.1} parent=5 // pred_fallthru
        _
      %p252 = scmp.lt.s32.totalorder %s17, 2
      // Predicated region
      $region41: #{bottleneck_forward.1} parent=5 // pred_check
        %p253 = pneg %p252
      $region42: #{bottleneck_forward.1} parent=5 // pred_check_branch
        %255 = sbr.rel (%p253) target = $region44
      $region43: #{bottleneck_forward.1} parent=5 // pred_region
        // Predicated region
        $region45: #{bottleneck_forward.1} parent=43 // pred_check
          %p256 = pneg %p37
        $region46: #{bottleneck_forward.1} parent=43 // pred_check_branch
          %258 = sbr.rel (%p256) target = $region48
        $region47: #{bottleneck_forward.1} parent=43 // pred_region
          %p259 = scmp.lt.s32.totalorder %s17, 1
          %s260 = scalar_select %p259, %s17, 1
          %s261 = smul.addr %s260, 8
          %s262 = smul.addr %s261, 4
          %s263 = scalar_lea.vmem %s0, %s262
        $region48: #{bottleneck_forward.1} parent=43 // pred_fallthru
          _
      $region44: #{bottleneck_forward.1} parent=5 // pred_fallthru
        _
      %p264 = scmp.le.s32.totalorder 1, %s17
      %p265 = scmp.lt.s32.totalorder %s17, 3
      %p266 = pnand %p264, %p265
      %p267 = pneg %p266
      // Predicated region
      $region49: #{bottleneck_forward.1} parent=5 // pred_check
        _
      $region50: #{bottleneck_forward.1} parent=5 // pred_check_branch
        %269 = sbr.rel (%p266) target = $region52
      $region51: #{bottleneck_forward.1} parent=5 // pred_region
        %s270 = ssub.s32 %s17, 1
        %p271 = scmp.lt.s32.totalorder %s22, 1
        %s272 = scalar_select %p271, %s22, 1
        %s273 = smul.addr %s272, 8
        %s274 = smul.addr %s273, 4
        %s275 = scalar_lea.vmem %s0, %s274
        %p276 = pneg %p43
        %p277 = pneg %p40
        %p278 = pneg %p64
        %p279 = pneg %p61
        %p280 = pneg %p85
        %p281 = pneg %p82
        %p282 = pneg %p106
        %p283 = pneg %p103
        %p284 = pneg %p127
        %p285 = pneg %p124
        %p286 = pneg %p148
        %p287 = pneg %p145
        %p288 = pneg %p169
        %p289 = pneg %p166
        %p290 = pneg %p190
        %p291 = pneg %p187
        %p292 = pneg %p216
        %p293 = pneg %p213
        %s294 = sand.u32 %s203, 1
        %s295 = scalar_lea.sflag [#allocation3], %s294
        %s296 = sand.u32 %s203, 1
        %s297 = smul.addr %s296, 64
        %s298 = scalar_lea.vmem [#allocation2], %s297
        %p299 = scmp.lt.s32.totalorder %s22, 1
        %s300 = scalar_select %p299, %s22, 1
        %s301 = smul.addr %s300, 8
        %s302 = smul.addr %s301, 4
        %s303 = scalar_lea.vmem %s0, %s302
        %v305 = vld [vmem:[%s303] sm:$0xf]
        %v306 = vld [vmem:[%s303 + $0x4] sm:$0xf]
        %v307 = vld [vmem:[%s303 + $0x8] sm:$0xf]
        %v308 = vld [vmem:[%s303 + $0xc] sm:$0xf]
        %v309 = vld [vmem:[%s303 + $0x10] sm:$0xf]
        %v310 = vld [vmem:[%s303 + $0x14] sm:$0xf]
        %v311 = vld [vmem:[%s303 + $0x18] sm:$0xf]
        %v312 = vld [vmem:[%s303 + $0x1c] sm:$0xf]
        %v313 = vld [vmem:[%s2] sm:$0xf]
        %v314 = vld [vmem:[%s2 + $0x4] sm:$0xf]
        %v315 = vld [vmem:[%s2 + $0x8] sm:$0xf]
        %v316 = vld [vmem:[%s2 + $0xc] sm:$0xf]
        %v317 = vld [vmem:[%s3] sm:$0x1]
        %v319 = vlaneseq
        %v320 = vshrl.u32 %v319, 7
        %v321 = vsub.s32 0, %v320
        %v322 = vrot.slane %v317, %v321
        %v332 = vunpack.c.l.b16 %v305
        %v333 = vunpack.c.l.b16 %v306
        %v334 = vunpack.c.l.b16 %v307
        %v335 = vunpack.c.l.b16 %v308
        %v336 = vunpack.c.l.b16 %v309
        %v337 = vunpack.c.l.b16 %v310
        %v338 = vunpack.c.l.b16 %v311
        %v339 = vunpack.c.l.b16 %v312
        %v340 = vpack.c.b16 %v333, %v332
        %v341 = vpack.c.b16 %v335, %v334
        %v342 = vpack.c.b16 %v337, %v336
        %v343 = vpack.c.b16 %v339, %v338
        %v348 = vunpack.c.l.b16 %v313
        %v349 = vunpack.c.l.b16 %v314
        %v350 = vunpack.c.l.b16 %v315
        %v351 = vunpack.c.l.b16 %v316
        %v352 = vpack.c.b16 %v349, %v348
        %v353 = vpack.c.b16 %v351, %v350
        %vm356 = vcmask 261120
        %v358 = vsel %vm356, %v340, 0
        %v361 = vsel %vm356, %v341, 0
        %v364 = vsel %vm356, %v342, 0
        %v367 = vsel %vm356, %v343, 0
        %369 = vmatprep.subr.bf16.mxu0 0
        %370 = vmatpush1.bf16.msra.mxu0 %v352
        %371 = vmatprep.subr.bf16.mxu0 0
        %372 = vmatpush1.bf16.msra.mxu0 %v353
        %373 = vmatprep.subr.bf16.mxu0 0
        %374 = vmatpush1.bf16.msra.mxu0 0
        %375 = vmatprep.subr.bf16.mxu0 0
        %376 = vmatpush1.bf16.msra.mxu0 0
        %377 = vmatprep.subr.bf16.mxu0 0
        %378 = vmatpush1.bf16.msra.mxu0 0
        %379 = vmatprep.subr.bf16.mxu0 0
        %380 = vmatpush1.bf16.msra.mxu0 0
        %381 = vmatprep.subr.bf16.mxu0 0
        %382 = vmatpush1.bf16.msra.mxu0 0
        %383 = vmatprep.subr.bf16.mxu0 0
        %384 = vmatpush1.bf16.msra.mxu0 0
        %385 = vmatprep.subr.bf16.mxu0 0
        %386 = vmatpush1.bf16.msra.mxu0 0
        %387 = vmatprep.subr.bf16.mxu0 0
        %388 = vmatpush1.bf16.msra.mxu0 0
        %389 = vmatprep.subr.bf16.mxu0 0
        %390 = vmatpush1.bf16.msra.mxu0 0
        %391 = vmatprep.subr.bf16.mxu0 0
        %392 = vmatpush1.bf16.msra.mxu0 0
        %393 = vmatprep.subr.bf16.mxu0 0
        %394 = vmatpush1.bf16.msra.mxu0 0
        %395 = vmatprep.subr.bf16.mxu0 0
        %396 = vmatpush1.bf16.msra.mxu0 0
        %397 = vmatprep.subr.bf16.mxu0 0
        %398 = vmatpush1.bf16.msra.mxu0 0
        %399 = vmatprep.subr.bf16.mxu0 0
        %400 = vmatpush1.bf16.msra.mxu0 0
        %401 = vmatprep.mubr.bf16.mxu0 0
        %402 = vmatmul.mubr.bf16.gmra.mrb[0].mxu0 %v358
        %v403 = vpop.f32.mrb[0].mxu0
        %v404 = vadd.f32 %v322, %v403
        %v405 = vpop.f32.mrb[0].mxu0
        %v406 = vpop.f32.mrb[0].mxu0
        %v407 = vadd.f32 %v322, %v406
        %v408 = vpop.f32.mrb[0].mxu0
        %409 = vmatprep.mubr.bf16.mxu0 0
        %410 = vmatmul.mubr.bf16.gmra.mrb[0].mxu0 %v361
        %v411 = vpop.f32.mrb[0].mxu0
        %v412 = vadd.f32 %v322, %v411
        %v413 = vpop.f32.mrb[0].mxu0
        %v414 = vpop.f32.mrb[0].mxu0
        %v415 = vadd.f32 %v322, %v414
        %v416 = vpop.f32.mrb[0].mxu0
        %417 = vmatprep.mubr.bf16.mxu0 0
        %418 = vmatmul.mubr.bf16.gmra.mrb[0].mxu0 %v364
        %v419 = vpop.f32.mrb[0].mxu0
        %v420 = vadd.f32 %v322, %v419
        %v421 = vpop.f32.mrb[0].mxu0
        %v422 = vpop.f32.mrb[0].mxu0
        %v423 = vadd.f32 %v322, %v422
        %v424 = vpop.f32.mrb[0].mxu0
        %425 = vmatprep.mubr.bf16.mxu0 0
        %426 = vmatmul.mubr.bf16.gmra.mrb[0].mxu0 %v367
        %v427 = vpop.f32.mrb[0].mxu0
        %v428 = vadd.f32 %v322, %v427
        %v429 = vpop.f32.mrb[0].mxu0
        %v430 = vpop.f32.mrb[0].mxu0
        %v431 = vadd.f32 %v322, %v430
        %v432 = vpop.f32.mrb[0].mxu0
        %433 = vdwg.mxu0
        %v434 = vmax.f32 %v404, 0.0
        %v435 = vmax.f32 %v407, 0.0
        %v436 = vmax.f32 %v412, 0.0
        %v437 = vmax.f32 %v415, 0.0
        %v438 = vmax.f32 %v420, 0.0
        %v439 = vmax.f32 %v423, 0.0
        %v440 = vmax.f32 %v428, 0.0
        %v441 = vmax.f32 %v431, 0.0
        %v442 = vrot.slane %v434, 7
        %v443 = vrot.slane %v435, 7
        %v444 = vrot.slane %v436, 7
        %v445 = vrot.slane %v437, 7
        %v446 = vrot.slane %v438, 7
        %v447 = vrot.slane %v439, 7
        %v448 = vrot.slane %v440, 7
        %v449 = vrot.slane %v441, 7
        %v450 = vlaneseq
        %v451 = vshrl.u32 %v450, 7
        %vm452 = vcmp.lt.s32.totalorder %v451, 1
        %v453 = vsel %vm452, %v448, %v449
        %v454 = vsel %vm452, %v447, %v448
        %v455 = vsel %vm452, %v446, %v447
        %v456 = vsel %vm452, %v445, %v446
        %v457 = vsel %vm452, %v444, %v445
        %v458 = vsel %vm452, %v443, %v444
        %v459 = vsel %vm452, %v442, %v443
        %v460 = vsel %vm452, %v449, %v442
        %v461 = vld [vmem:[%s1] sm:$0xff]
        %v462 = vld [vmem:[%s1 + $0x8] sm:$0xff]
        %v463 = vld [vmem:[%s1 + $0x10] sm:$0xff]
        %v464 = vld [vmem:[%s1 + $0x18] sm:$0xff]
        %v465 = vld [vmem:[%s1 + $0x20] sm:$0xff]
        %v466 = vld [vmem:[%s1 + $0x28] sm:$0xff]
        %v467 = vld [vmem:[%s1 + $0x30] sm:$0xff]
        %v468 = vld [vmem:[%s1 + $0x38] sm:$0xff]
        %470 = vset.pattern.permute.xlu0 0
        %471 = vperm.xlu0 %470, %v461
        %v472 = vpop.permute.xlu0 %471
        %475 = vset.pattern.permute.xlu0 0
        %476 = vperm.xlu0 %475, %v462
        %v477 = vpop.permute.xlu0 %476
        %480 = vset.pattern.permute.xlu0 0
        %481 = vperm.xlu0 %480, %v463
        %v482 = vpop.permute.xlu0 %481
        %485 = vset.pattern.permute.xlu0 0
        %486 = vperm.xlu0 %485, %v464
        %v487 = vpop.permute.xlu0 %486
        %490 = vset.pattern.permute.xlu0 0
        %491 = vperm.xlu0 %490, %v465
        %v492 = vpop.permute.xlu0 %491
        %495 = vset.pattern.permute.xlu0 0
        %496 = vperm.xlu0 %495, %v466
        %v497 = vpop.permute.xlu0 %496
        %500 = vset.pattern.permute.xlu0 0
        %501 = vperm.xlu0 %500, %v467
        %v502 = vpop.permute.xlu0 %501
        %505 = vset.pattern.permute.xlu0 0
        %506 = vperm.xlu0 %505, %v468
        %v507 = vpop.permute.xlu0 %506
        %v509 = vmul.f32 %v453, %v472
        %v510 = vmul.f32 %v460, %v477
        %v511 = vmul.f32 %v459, %v482
        %v512 = vmul.f32 %v458, %v487
        %v513 = vmul.f32 %v457, %v492
        %v514 = vmul.f32 %v456, %v497
        %v515 = vmul.f32 %v455, %v502
        %v516 = vmul.f32 %v454, %v507
        %s517 = scalar_lea.vmem %s1, 64
        %v518 = vld [vmem:[%s517] sm:$0xff]
        %v519 = vld [vmem:[%s517 + $0x8] sm:$0xff]
        %v520 = vld [vmem:[%s517 + $0x10] sm:$0xff]
        %v521 = vld [vmem:[%s517 + $0x18] sm:$0xff]
        %v522 = vld [vmem:[%s517 + $0x20] sm:$0xff]
        %v523 = vld [vmem:[%s517 + $0x28] sm:$0xff]
        %v524 = vld [vmem:[%s517 + $0x30] sm:$0xff]
        %v525 = vld [vmem:[%s517 + $0x38] sm:$0xff]
        %527 = vset.pattern.permute.xlu0 0
        %528 = vperm.xlu0 %527, %v518
        %v529 = vpop.permute.xlu0 %528
        %532 = vset.pattern.permute.xlu0 0
        %533 = vperm.xlu0 %532, %v519
        %v534 = vpop.permute.xlu0 %533
        %537 = vset.pattern.permute.xlu0 0
        %538 = vperm.xlu0 %537, %v520
        %v539 = vpop.permute.xlu0 %538
        %542 = vset.pattern.permute.xlu0 0
        %543 = vperm.xlu0 %542, %v521
        %v544 = vpop.permute.xlu0 %543
        %547 = vset.pattern.permute.xlu0 0
        %548 = vperm.xlu0 %547, %v522
        %v549 = vpop.permute.xlu0 %548
        %552 = vset.pattern.permute.xlu0 0
        %553 = vperm.xlu0 %552, %v523
        %v554 = vpop.permute.xlu0 %553
        %557 = vset.pattern.permute.xlu0 0
        %558 = vperm.xlu0 %557, %v524
        %v559 = vpop.permute.xlu0 %558
        %562 = vset.pattern.permute.xlu0 0
        %563 = vperm.xlu0 %562, %v525
        %v564 = vpop.permute.xlu0 %563
        %v566 = vmul.f32 %v441, %v529
        %v567 = vmul.f32 %v434, %v534
        %v568 = vmul.f32 %v435, %v539
        %v569 = vmul.f32 %v436, %v544
        %v570 = vmul.f32 %v437, %v549
        %v571 = vmul.f32 %v438, %v554
        %v572 = vmul.f32 %v439, %v559
        %v573 = vmul.f32 %v440, %v564
        %v574 = vrot.slane %v434, 1
        %v575 = vrot.slane %v435, 1
        %v576 = vrot.slane %v436, 1
        %v577 = vrot.slane %v437, 1
        %v578 = vrot.slane %v438, 1
        %v579 = vrot.slane %v439, 1
        %v580 = vrot.slane %v440, 1
        %v581 = vrot.slane %v441, 1
        %vm582 = vcmp.lt.s32.totalorder %v451, 7
        %v583 = vsel %vm582, %v580, %v581
        %v584 = vsel %vm582, %v579, %v580
        %v585 = vsel %vm582, %v578, %v579
        %v586 = vsel %vm582, %v577, %v578
        %v587 = vsel %vm582, %v576, %v577
        %v588 = vsel %vm582, %v575, %v576
        %v589 = vsel %vm582, %v574, %v575
        %v590 = vsel %vm582, %v581, %v574
        %s591 = scalar_lea.vmem %s1, 128
        %v592 = vld [vmem:[%s591] sm:$0xff]
        %v593 = vld [vmem:[%s591 + $0x8] sm:$0xff]
        %v594 = vld [vmem:[%s591 + $0x10] sm:$0xff]
        %v595 = vld [vmem:[%s591 + $0x18] sm:$0xff]
        %v596 = vld [vmem:[%s591 + $0x20] sm:$0xff]
        %v597 = vld [vmem:[%s591 + $0x28] sm:$0xff]
        %v598 = vld [vmem:[%s591 + $0x30] sm:$0xff]
        %v599 = vld [vmem:[%s591 + $0x38] sm:$0xff]
        %601 = vset.pattern.permute.xlu0 0
        %602 = vperm.xlu0 %601, %v592
        %v603 = vpop.permute.xlu0 %602
        %606 = vset.pattern.permute.xlu0 0
        %607 = vperm.xlu0 %606, %v593
        %v608 = vpop.permute.xlu0 %607
        %611 = vset.pattern.permute.xlu0 0
        %612 = vperm.xlu0 %611, %v594
        %v613 = vpop.permute.xlu0 %612
        %616 = vset.pattern.permute.xlu0 0
        %617 = vperm.xlu0 %616, %v595
        %v618 = vpop.permute.xlu0 %617
        %621 = vset.pattern.permute.xlu0 0
        %622 = vperm.xlu0 %621, %v596
        %v623 = vpop.permute.xlu0 %622
        %626 = vset.pattern.permute.xlu0 0
        %627 = vperm.xlu0 %626, %v597
        %v628 = vpop.permute.xlu0 %627
        %631 = vset.pattern.permute.xlu0 0
        %632 = vperm.xlu0 %631, %v598
        %v633 = vpop.permute.xlu0 %632
        %636 = vset.pattern.permute.xlu0 0
        %637 = vperm.xlu0 %636, %v599
        %v638 = vpop.permute.xlu0 %637
        %v640 = vmul.f32 %v590, %v603
        %v641 = vmul.f32 %v589, %v608
        %v642 = vmul.f32 %v588, %v613
        %v643 = vmul.f32 %v587, %v618
        %v644 = vmul.f32 %v586, %v623
        %v645 = vmul.f32 %v585, %v628
        %v646 = vmul.f32 %v584, %v633
        %v647 = vmul.f32 %v583, %v638
        %s648 = scalar_lea.vmem %s1, 192
        %v649 = vld [vmem:[%s648] sm:$0xff]
        %v650 = vld [vmem:[%s648 + $0x8] sm:$0xff]
        %v651 = vld [vmem:[%s648 + $0x10] sm:$0xff]
        %v652 = vld [vmem:[%s648 + $0x18] sm:$0xff]
        %v653 = vld [vmem:[%s648 + $0x20] sm:$0xff]
        %v654 = vld [vmem:[%s648 + $0x28] sm:$0xff]
        %v655 = vld [vmem:[%s648 + $0x30] sm:$0xff]
        %v656 = vld [vmem:[%s648 + $0x38] sm:$0xff]
        %658 = vset.pattern.permute.xlu0 0
        %659 = vperm.xlu0 %658, %v649
        %v660 = vpop.permute.xlu0 %659
        %663 = vset.pattern.permute.xlu0 0
        %664 = vperm.xlu0 %663, %v650
        %v665 = vpop.permute.xlu0 %664
        %668 = vset.pattern.permute.xlu0 0
        %669 = vperm.xlu0 %668, %v651
        %v670 = vpop.permute.xlu0 %669
        %673 = vset.pattern.permute.xlu0 0
        %674 = vperm.xlu0 %673, %v652
        %v675 = vpop.permute.xlu0 %674
        %678 = vset.pattern.permute.xlu0 0
        %679 = vperm.xlu0 %678, %v653
        %v680 = vpop.permute.xlu0 %679
        %683 = vset.pattern.permute.xlu0 0
        %684 = vperm.xlu0 %683, %v654
        %v685 = vpop.permute.xlu0 %684
        %688 = vset.pattern.permute.xlu0 0
        %689 = vperm.xlu0 %688, %v655
        %v690 = vpop.permute.xlu0 %689
        %693 = vset.pattern.permute.xlu0 0
        %694 = vperm.xlu0 %693, %v656
        %v695 = vpop.permute.xlu0 %694
        %v697 = vmul.f32 %v460, %v660
        %v698 = vmul.f32 %v459, %v665
        %v699 = vmul.f32 %v458, %v670
        %v700 = vmul.f32 %v457, %v675
        %v701 = vmul.f32 %v456, %v680
        %v702 = vmul.f32 %v455, %v685
        %v703 = vmul.f32 %v454, %v690
        %v704 = vmul.f32 %v453, %v695
        %s705 = scalar_lea.vmem %s1, 320
        %v706 = vld [vmem:[%s705] sm:$0xff]
        %v707 = vld [vmem:[%s705 + $0x8] sm:$0xff]
        %v708 = vld [vmem:[%s705 + $0x10] sm:$0xff]
        %v709 = vld [vmem:[%s705 + $0x18] sm:$0xff]
        %v710 = vld [vmem:[%s705 + $0x20] sm:$0xff]
        %v711 = vld [vmem:[%s705 + $0x28] sm:$0xff]
        %v712 = vld [vmem:[%s705 + $0x30] sm:$0xff]
        %v713 = vld [vmem:[%s705 + $0x38] sm:$0xff]
        %715 = vset.pattern.permute.xlu0 0
        %716 = vperm.xlu0 %715, %v706
        %v717 = vpop.permute.xlu0 %716
        %720 = vset.pattern.permute.xlu0 0
        %721 = vperm.xlu0 %720, %v707
        %v722 = vpop.permute.xlu0 %721
        %725 = vset.pattern.permute.xlu0 0
        %726 = vperm.xlu0 %725, %v708
        %v727 = vpop.permute.xlu0 %726
        %730 = vset.pattern.permute.xlu0 0
        %731 = vperm.xlu0 %730, %v709
        %v732 = vpop.permute.xlu0 %731
        %735 = vset.pattern.permute.xlu0 0
        %736 = vperm.xlu0 %735, %v710
        %v737 = vpop.permute.xlu0 %736
        %740 = vset.pattern.permute.xlu0 0
        %741 = vperm.xlu0 %740, %v711
        %v742 = vpop.permute.xlu0 %741
        %745 = vset.pattern.permute.xlu0 0
        %746 = vperm.xlu0 %745, %v712
        %v747 = vpop.permute.xlu0 %746
        %750 = vset.pattern.permute.xlu0 0
        %751 = vperm.xlu0 %750, %v713
        %v752 = vpop.permute.xlu0 %751
        %v754 = vmul.f32 %v589, %v717
        %v755 = vmul.f32 %v588, %v722
        %v756 = vmul.f32 %v587, %v727
        %v757 = vmul.f32 %v586, %v732
        %v758 = vmul.f32 %v585, %v737
        %v759 = vmul.f32 %v584, %v742
        %v760 = vmul.f32 %v583, %v747
        %v761 = vmul.f32 %v590, %v752
        %s762 = scalar_lea.vmem %s1, 384
        %v763 = vld [vmem:[%s762] sm:$0xff]
        %v764 = vld [vmem:[%s762 + $0x8] sm:$0xff]
        %v765 = vld [vmem:[%s762 + $0x10] sm:$0xff]
        %v766 = vld [vmem:[%s762 + $0x18] sm:$0xff]
        %v767 = vld [vmem:[%s762 + $0x20] sm:$0xff]
        %v768 = vld [vmem:[%s762 + $0x28] sm:$0xff]
        %v769 = vld [vmem:[%s762 + $0x30] sm:$0xff]
        %v770 = vld [vmem:[%s762 + $0x38] sm:$0xff]
        %772 = vset.pattern.permute.xlu0 0
        %773 = vperm.xlu0 %772, %v763
        %v774 = vpop.permute.xlu0 %773
        %777 = vset.pattern.permute.xlu0 0
        %778 = vperm.xlu0 %777, %v764
        %v779 = vpop.permute.xlu0 %778
        %782 = vset.pattern.permute.xlu0 0
        %783 = vperm.xlu0 %782, %v765
        %v784 = vpop.permute.xlu0 %783
        %787 = vset.pattern.permute.xlu0 0
        %788 = vperm.xlu0 %787, %v766
        %v789 = vpop.permute.xlu0 %788
        %792 = vset.pattern.permute.xlu0 0
        %793 = vperm.xlu0 %792, %v767
        %v794 = vpop.permute.xlu0 %793
        %797 = vset.pattern.permute.xlu0 0
        %798 = vperm.xlu0 %797, %v768
        %v799 = vpop.permute.xlu0 %798
        %802 = vset.pattern.permute.xlu0 0
        %803 = vperm.xlu0 %802, %v769
        %v804 = vpop.permute.xlu0 %803
        %807 = vset.pattern.permute.xlu0 0
        %808 = vperm.xlu0 %807, %v770
        %v809 = vpop.permute.xlu0 %808
        %v811 = vmul.f32 %v459, %v774
        %v812 = vmul.f32 %v458, %v779
        %v813 = vmul.f32 %v457, %v784
        %v814 = vmul.f32 %v456, %v789
        %v815 = vmul.f32 %v455, %v794
        %v816 = vmul.f32 %v454, %v799
        %v817 = vmul.f32 %v453, %v804
        %v818 = vmul.f32 %v460, %v809
        %s819 = scalar_lea.vmem %s1, 448
        %v820 = vld [vmem:[%s819] sm:$0xff]
        %v821 = vld [vmem:[%s819 + $0x8] sm:$0xff]
        %v822 = vld [vmem:[%s819 + $0x10] sm:$0xff]
        %v823 = vld [vmem:[%s819 + $0x18] sm:$0xff]
        %v824 = vld [vmem:[%s819 + $0x20] sm:$0xff]
        %v825 = vld [vmem:[%s819 + $0x28] sm:$0xff]
        %v826 = vld [vmem:[%s819 + $0x30] sm:$0xff]
        %v827 = vld [vmem:[%s819 + $0x38] sm:$0xff]
        %829 = vset.pattern.permute.xlu0 0
        %830 = vperm.xlu0 %829, %v820
        %v831 = vpop.permute.xlu0 %830
        %834 = vset.pattern.permute.xlu0 0
        %835 = vperm.xlu0 %834, %v821
        %v836 = vpop.permute.xlu0 %835
        %839 = vset.pattern.permute.xlu0 0
        %840 = vperm.xlu0 %839, %v822
        %v841 = vpop.permute.xlu0 %840
        %844 = vset.pattern.permute.xlu0 0
        %845 = vperm.xlu0 %844, %v823
        %v846 = vpop.permute.xlu0 %845
        %849 = vset.pattern.permute.xlu0 0
        %850 = vperm.xlu0 %849, %v824
        %v851 = vpop.permute.xlu0 %850
        %854 = vset.pattern.permute.xlu0 0
        %855 = vperm.xlu0 %854, %v825
        %v856 = vpop.permute.xlu0 %855
        %859 = vset.pattern.permute.xlu0 0
        %860 = vperm.xlu0 %859, %v826
        %v861 = vpop.permute.xlu0 %860
        %864 = vset.pattern.permute.xlu0 0
        %865 = vperm.xlu0 %864, %v827
        %v866 = vpop.permute.xlu0 %865
        %v868 = vmul.f32 %v435, %v831
        %v869 = vmul.f32 %v436, %v836
        %v870 = vmul.f32 %v437, %v841
        %v871 = vmul.f32 %v438, %v846
        %v872 = vmul.f32 %v439, %v851
        %v873 = vmul.f32 %v440, %v856
        %v874 = vmul.f32 %v441, %v861
        %v875 = vmul.f32 %v434, %v866
        %s876 = scalar_lea.vmem %s1, 512
        %v877 = vld [vmem:[%s876] sm:$0xff]
        %v878 = vld [vmem:[%s876 + $0x8] sm:$0xff]
        %v879 = vld [vmem:[%s876 + $0x10] sm:$0xff]
        %v880 = vld [vmem:[%s876 + $0x18] sm:$0xff]
        %v881 = vld [vmem:[%s876 + $0x20] sm:$0xff]
        %v882 = vld [vmem:[%s876 + $0x28] sm:$0xff]
        %v883 = vld [vmem:[%s876 + $0x30] sm:$0xff]
        %v884 = vld [vmem:[%s876 + $0x38] sm:$0xff]
        %886 = vset.pattern.permute.xlu0 0
        %887 = vperm.xlu0 %886, %v877
        %v888 = vpop.permute.xlu0 %887
        %891 = vset.pattern.permute.xlu0 0
        %892 = vperm.xlu0 %891, %v878
        %v893 = vpop.permute.xlu0 %892
        %896 = vset.pattern.permute.xlu0 0
        %897 = vperm.xlu0 %896, %v879
        %v898 = vpop.permute.xlu0 %897
        %901 = vset.pattern.permute.xlu0 0
        %902 = vperm.xlu0 %901, %v880
        %v903 = vpop.permute.xlu0 %902
        %906 = vset.pattern.permute.xlu0 0
        %907 = vperm.xlu0 %906, %v881
        %v908 = vpop.permute.xlu0 %907
        %911 = vset.pattern.permute.xlu0 0
        %912 = vperm.xlu0 %911, %v882
        %v913 = vpop.permute.xlu0 %912
        %916 = vset.pattern.permute.xlu0 0
        %917 = vperm.xlu0 %916, %v883
        %v918 = vpop.permute.xlu0 %917
        %921 = vset.pattern.permute.xlu0 0
        %922 = vperm.xlu0 %921, %v884
        %v923 = vpop.permute.xlu0 %922
        %v925 = vmul.f32 %v588, %v888
        %v926 = vmul.f32 %v587, %v893
        %v927 = vmul.f32 %v586, %v898
        %v928 = vmul.f32 %v585, %v903
        %v929 = vmul.f32 %v584, %v908
        %v930 = vmul.f32 %v583, %v913
        %v931 = vmul.f32 %v590, %v918
        %v932 = vmul.f32 %v589, %v923
        %941 = vrot.lane.b32.xlu0 %v566, 16
        %v942 = vpop.permute.xlu0 %941
        %943 = vrot.lane.b32.xlu0 %v567, 16
        %v944 = vpop.permute.xlu0 %943
        %945 = vrot.lane.b32.xlu0 %v568, 16
        %v946 = vpop.permute.xlu0 %945
        %947 = vrot.lane.b32.xlu0 %v569, 16
        %v948 = vpop.permute.xlu0 %947
        %949 = vrot.lane.b32.xlu0 %v570, 16
        %v950 = vpop.permute.xlu0 %949
        %951 = vrot.lane.b32.xlu0 %v571, 16
        %v952 = vpop.permute.xlu0 %951
        %953 = vrot.lane.b32.xlu0 %v572, 16
        %v954 = vpop.permute.xlu0 %953
        %955 = vrot.lane.b32.xlu0 %v573, 16
        %v956 = vpop.permute.xlu0 %955
        %973 = vrot.lane.b32.xlu0 %v640, 32
        %v974 = vpop.permute.xlu0 %973
        %975 = vrot.lane.b32.xlu0 %v641, 32
        %v976 = vpop.permute.xlu0 %975
        %977 = vrot.lane.b32.xlu0 %v642, 32
        %v978 = vpop.permute.xlu0 %977
        %979 = vrot.lane.b32.xlu0 %v643, 32
        %v980 = vpop.permute.xlu0 %979
        %981 = vrot.lane.b32.xlu0 %v644, 32
        %v982 = vpop.permute.xlu0 %981
        %983 = vrot.lane.b32.xlu0 %v645, 32
        %v984 = vpop.permute.xlu0 %983
        %985 = vrot.lane.b32.xlu0 %v646, 32
        %v986 = vpop.permute.xlu0 %985
        %987 = vrot.lane.b32.xlu0 %v647, 32
        %v988 = vpop.permute.xlu0 %987
        %1005 = vrot.lane.b32.xlu0 %v697, 48
        %v1006 = vpop.permute.xlu0 %1005
        %1007 = vrot.lane.b32.xlu0 %v698, 48
        %v1008 = vpop.permute.xlu0 %1007
        %1009 = vrot.lane.b32.xlu0 %v699, 48
        %v1010 = vpop.permute.xlu0 %1009
        %1011 = vrot.lane.b32.xlu0 %v700, 48
        %v1012 = vpop.permute.xlu0 %1011
        %1013 = vrot.lane.b32.xlu0 %v701, 48
        %v1014 = vpop.permute.xlu0 %1013
        %1015 = vrot.lane.b32.xlu0 %v702, 48
        %v1016 = vpop.permute.xlu0 %1015
        %1017 = vrot.lane.b32.xlu0 %v703, 48
        %v1018 = vpop.permute.xlu0 %1017
        %1019 = vrot.lane.b32.xlu0 %v704, 48
        %v1020 = vpop.permute.xlu0 %1019
        %1037 = vrot.lane.b32.xlu0 %v434, 64
        %v1038 = vpop.permute.xlu0 %1037
        %1039 = vrot.lane.b32.xlu0 %v435, 64
        %v1040 = vpop.permute.xlu0 %1039
        %1041 = vrot.lane.b32.xlu0 %v436, 64
        %v1042 = vpop.permute.xlu0 %1041
        %1043 = vrot.lane.b32.xlu0 %v437, 64
        %v1044 = vpop.permute.xlu0 %1043
        %1045 = vrot.lane.b32.xlu0 %v438, 64
        %v1046 = vpop.permute.xlu0 %1045
        %1047 = vrot.lane.b32.xlu0 %v439, 64
        %v1048 = vpop.permute.xlu0 %1047
        %1049 = vrot.lane.b32.xlu0 %v440, 64
        %v1050 = vpop.permute.xlu0 %1049
        %1051 = vrot.lane.b32.xlu0 %v441, 64
        %v1052 = vpop.permute.xlu0 %1051
        %1069 = vrot.lane.b32.xlu0 %v754, 80
        %v1070 = vpop.permute.xlu0 %1069
        %1071 = vrot.lane.b32.xlu0 %v755, 80
        %v1072 = vpop.permute.xlu0 %1071
        %1073 = vrot.lane.b32.xlu0 %v756, 80
        %v1074 = vpop.permute.xlu0 %1073
        %1075 = vrot.lane.b32.xlu0 %v757, 80
        %v1076 = vpop.permute.xlu0 %1075
        %1077 = vrot.lane.b32.xlu0 %v758, 80
        %v1078 = vpop.permute.xlu0 %1077
        %1079 = vrot.lane.b32.xlu0 %v759, 80
        %v1080 = vpop.permute.xlu0 %1079
        %1081 = vrot.lane.b32.xlu0 %v760, 80
        %v1082 = vpop.permute.xlu0 %1081
        %1083 = vrot.lane.b32.xlu0 %v761, 80
        %v1084 = vpop.permute.xlu0 %1083
        %1101 = vrot.lane.b32.xlu0 %v811, 96
        %v1102 = vpop.permute.xlu0 %1101
        %1103 = vrot.lane.b32.xlu0 %v812, 96
        %v1104 = vpop.permute.xlu0 %1103
        %1105 = vrot.lane.b32.xlu0 %v813, 96
        %v1106 = vpop.permute.xlu0 %1105
        %1107 = vrot.lane.b32.xlu0 %v814, 96
        %v1108 = vpop.permute.xlu0 %1107
        %1109 = vrot.lane.b32.xlu0 %v815, 96
        %v1110 = vpop.permute.xlu0 %1109
        %1111 = vrot.lane.b32.xlu0 %v816, 96
        %v1112 = vpop.permute.xlu0 %1111
        %1113 = vrot.lane.b32.xlu0 %v817, 96
        %v1114 = vpop.permute.xlu0 %1113
        %1115 = vrot.lane.b32.xlu0 %v818, 96
        %v1116 = vpop.permute.xlu0 %1115
        %1133 = vrot.lane.b32.xlu0 %v868, 112
        %v1134 = vpop.permute.xlu0 %1133
        %1135 = vrot.lane.b32.xlu0 %v869, 112
        %v1136 = vpop.permute.xlu0 %1135
        %1137 = vrot.lane.b32.xlu0 %v870, 112
        %v1138 = vpop.permute.xlu0 %1137
        %1139 = vrot.lane.b32.xlu0 %v871, 112
        %v1140 = vpop.permute.xlu0 %1139
        %1141 = vrot.lane.b32.xlu0 %v872, 112
        %v1142 = vpop.permute.xlu0 %1141
        %1143 = vrot.lane.b32.xlu0 %v873, 112
        %v1144 = vpop.permute.xlu0 %1143
        %1145 = vrot.lane.b32.xlu0 %v874, 112
        %v1146 = vpop.permute.xlu0 %1145
        %1147 = vrot.lane.b32.xlu0 %v875, 112
        %v1148 = vpop.permute.xlu0 %1147
        %vm1157 = vcmask 130048
        %v1158 = vsel %vm1157, %v509, %v942
        %v1159 = vsel %vm1157, %v510, %v944
        %v1160 = vsel %vm1157, %v511, %v946
        %v1161 = vsel %vm1157, %v512, %v948
        %v1162 = vsel %vm1157, %v513, %v950
        %v1163 = vsel %vm1157, %v514, %v952
        %v1164 = vsel %vm1157, %v515, %v954
        %v1165 = vsel %vm1157, %v516, %v956
        %v1166 = vsel %vm356, %v1158, %v974
        %v1167 = vsel %vm356, %v1159, %v976
        %v1168 = vsel %vm356, %v1160, %v978
        %v1169 = vsel %vm356, %v1161, %v980
        %v1170 = vsel %vm356, %v1162, %v982
        %v1171 = vsel %vm356, %v1163, %v984
        %v1172 = vsel %vm356, %v1164, %v986
        %v1173 = vsel %vm356, %v1165, %v988
        %vm1174 = vcmask 392192
        %v1175 = vsel %vm1174, %v1166, %v1006
        %v1176 = vsel %vm1174, %v1167, %v1008
        %v1177 = vsel %vm1174, %v1168, %v1010
        %v1178 = vsel %vm1174, %v1169, %v1012
        %v1179 = vsel %vm1174, %v1170, %v1014
        %v1180 = vsel %vm1174, %v1171, %v1016
        %v1181 = vsel %vm1174, %v1172, %v1018
        %v1182 = vsel %vm1174, %v1173, %v1020
        %vm1183 = vcmask 523264
        %v1184 = vsel %vm1183, %v1175, %v1038
        %v1185 = vsel %vm1183, %v1176, %v1040
        %v1186 = vsel %vm1183, %v1177, %v1042
        %v1187 = vsel %vm1183, %v1178, %v1044
        %v1188 = vsel %vm1183, %v1179, %v1046
        %v1189 = vsel %vm1183, %v1180, %v1048
        %v1190 = vsel %vm1183, %v1181, %v1050
        %v1191 = vsel %vm1183, %v1182, %v1052
        %vm1192 = vcmask 654336
        %v1193 = vsel %vm1192, %v1184, %v1070
        %v1194 = vsel %vm1192, %v1185, %v1072
        %v1195 = vsel %vm1192, %v1186, %v1074
        %v1196 = vsel %vm1192, %v1187, %v1076
        %v1197 = vsel %vm1192, %v1188, %v1078
        %v1198 = vsel %vm1192, %v1189, %v1080
        %v1199 = vsel %vm1192, %v1190, %v1082
        %v1200 = vsel %vm1192, %v1191, %v1084
        %vm1201 = vcmask 785408
        %v1202 = vsel %vm1201, %v1193, %v1102
        %v1203 = vsel %vm1201, %v1194, %v1104
        %v1204 = vsel %vm1201, %v1195, %v1106
        %v1205 = vsel %vm1201, %v1196, %v1108
        %v1206 = vsel %vm1201, %v1197, %v1110
        %v1207 = vsel %vm1201, %v1198, %v1112
        %v1208 = vsel %vm1201, %v1199, %v1114
        %v1209 = vsel %vm1201, %v1200, %v1116
        %vm1210 = vcmask 916480
        %v1211 = vsel %vm1210, %v1202, %v1134
        %v1212 = vsel %vm1210, %v1203, %v1136
        %v1213 = vsel %vm1210, %v1204, %v1138
        %v1214 = vsel %vm1210, %v1205, %v1140
        %v1215 = vsel %vm1210, %v1206, %v1142
        %v1216 = vsel %vm1210, %v1207, %v1144
        %v1217 = vsel %vm1210, %v1208, %v1146
        %v1218 = vsel %vm1210, %v1209, %v1148
        %v1219 = vpack.c.bf16 %v1212, %v1211
        %v1220 = vpack.c.bf16 %v926, %v925
        %v1221 = vpack.c.bf16 %v1214, %v1213
        %v1222 = vpack.c.bf16 %v928, %v927
        %v1223 = vpack.c.bf16 %v1216, %v1215
        %v1224 = vpack.c.bf16 %v930, %v929
        %v1225 = vpack.c.bf16 %v1218, %v1217
        %v1226 = vpack.c.bf16 %v932, %v931
        %v1227 = vld [vmem:[%s4] sm:$0xf]
        %v1228 = vld [vmem:[%s4 + $0x4] sm:$0xf]
        %v1229 = vld [vmem:[%s4 + $0x8] sm:$0xf]
        %v1230 = vld [vmem:[%s4 + $0xc] sm:$0xf]
        %v1231 = vld [vmem:[%s4 + $0x10] sm:$0xf]
        %v1232 = vld [vmem:[%s4 + $0x14] sm:$0xf]
        %v1233 = vld [vmem:[%s4 + $0x18] sm:$0xf]
        %v1234 = vld [vmem:[%s4 + $0x1c] sm:$0xf]
        %v1235 = vld [vmem:[%s4 + $0x20] sm:$0xf]
        %v1236 = vld [vmem:[%s4 + $0x24] sm:$0xf]
        %v1237 = vld [vmem:[%s4 + $0x28] sm:$0xf]
        %v1238 = vld [vmem:[%s4 + $0x2c] sm:$0xf]
        %v1239 = vld [vmem:[%s4 + $0x30] sm:$0xf]
        %v1240 = vld [vmem:[%s4 + $0x34] sm:$0xf]
        %v1241 = vld [vmem:[%s4 + $0x38] sm:$0xf]
        %v1242 = vld [vmem:[%s4 + $0x3c] sm:$0xf]
        %v1243 = vld [vmem:[%s4 + $0x40] sm:$0xf]
        %v1244 = vld [vmem:[%s4 + $0x44] sm:$0xf]
        %v1245 = vld [vmem:[%s5] sm:$0x1]
        %v1247 = vlaneseq
        %v1248 = vshrl.u32 %v1247, 7
        %v1249 = vsub.s32 0, %v1248
        %v1250 = vrot.slane %v1245, %v1249
        %v1270 = vunpack.c.l.b16 %v1227
        %v1271 = vunpack.c.l.b16 %v1228
        %v1272 = vunpack.c.l.b16 %v1229
        %v1273 = vunpack.c.l.b16 %v1230
        %v1274 = vunpack.c.l.b16 %v1231
        %v1275 = vunpack.c.l.b16 %v1232
        %v1276 = vunpack.c.l.b16 %v1233
        %v1277 = vunpack.c.l.b16 %v1234
        %v1278 = vunpack.c.l.b16 %v1235
        %v1279 = vunpack.c.l.b16 %v1236
        %v1280 = vunpack.c.l.b16 %v1237
        %v1281 = vunpack.c.l.b16 %v1238
        %v1282 = vunpack.c.l.b16 %v1239
        %v1283 = vunpack.c.l.b16 %v1240
        %v1284 = vunpack.c.l.b16 %v1241
        %v1285 = vunpack.c.l.b16 %v1242
        %v1286 = vunpack.c.l.b16 %v1243
        %v1287 = vunpack.c.l.b16 %v1244
        %v1288 = vpack.c.b16 %v1271, %v1270
        %v1289 = vpack.c.b16 %v1273, %v1272
        %v1290 = vpack.c.b16 %v1275, %v1274
        %v1291 = vpack.c.b16 %v1277, %v1276
        %v1292 = vpack.c.b16 %v1279, %v1278
        %v1293 = vpack.c.b16 %v1281, %v1280
        %v1294 = vpack.c.b16 %v1283, %v1282
        %v1295 = vpack.c.b16 %v1285, %v1284
        %v1296 = vpack.c.b16 %v1287, %v1286
        %v1307 = vsel %vm1157, %v1220, 0
        %v1310 = vsel %vm1157, %v1222, 0
        %v1313 = vsel %vm1157, %v1224, 0
        %v1316 = vsel %vm1157, %v1226, 0
        %1318 = vmatprep.subr.bf16.mxu0 0
        %1319 = vmatpush1.bf16.msra.mxu0 %v1288
        %1320 = vmatprep.subr.bf16.mxu0 0
        %1321 = vmatpush1.bf16.msra.mxu0 %v1289
        %1322 = vmatprep.subr.bf16.mxu0 0
        %1323 = vmatpush1.bf16.msra.mxu0 %v1290
        %1324 = vmatprep.subr.bf16.mxu0 0
        %1325 = vmatpush1.bf16.msra.mxu0 %v1291
        %1326 = vmatprep.subr.bf16.mxu0 0
        %1327 = vmatpush1.bf16.msra.mxu0 %v1292
        %1328 = vmatprep.subr.bf16.mxu0 0
        %1329 = vmatpush1.bf16.msra.mxu0 %v1293
        %1330 = vmatprep.subr.bf16.mxu0 0
        %1331 = vmatpush1.bf16.msra.mxu0 %v1294
        %1332 = vmatprep.subr.bf16.mxu0 0
        %1333 = vmatpush1.bf16.msra.mxu0 %v1295
        %1334 = vmatprep.subr.bf16.mxu0 0
        %1335 = vmatpush1.bf16.msra.mxu0 %v1296
        %1336 = vmatprep.subr.bf16.mxu0 0
        %1337 = vmatpush1.bf16.msra.mxu0 0
        %1338 = vmatprep.subr.bf16.mxu0 0
        %1339 = vmatpush1.bf16.msra.mxu0 0
        %1340 = vmatprep.subr.bf16.mxu0 0
        %1341 = vmatpush1.bf16.msra.mxu0 0
        %1342 = vmatprep.subr.bf16.mxu0 0
        %1343 = vmatpush1.bf16.msra.mxu0 0
        %1344 = vmatprep.subr.bf16.mxu0 0
        %1345 = vmatpush1.bf16.msra.mxu0 0
        %1346 = vmatprep.subr.bf16.mxu0 0
        %1347 = vmatpush1.bf16.msra.mxu0 0
        %1348 = vmatprep.subr.bf16.mxu0 0
        %1349 = vmatpush1.bf16.msra.mxu0 0
        %1350 = vmatprep.mubr.bf16.mxu0 %v1307
        %1351 = vmatmul.mubr.bf16.gmra.mrb[0].mxu0 %v1219
        %v1352 = vpop.f32.mrb[0].mxu0
        %v1353 = vadd.f32 %v1250, %v1352
        %v1354 = vpop.f32.mrb[0].mxu0
        %v1355 = vpop.f32.mrb[0].mxu0
        %v1356 = vadd.f32 %v1250, %v1355
        %v1357 = vpop.f32.mrb[0].mxu0
        %1358 = vmatprep.mubr.bf16.mxu0 %v1310
        %1359 = vmatmul.mubr.bf16.gmra.mrb[0].mxu0 %v1221
        %v1360 = vpop.f32.mrb[0].mxu0
        %v1361 = vadd.f32 %v1250, %v1360
        %v1362 = vpop.f32.mrb[0].mxu0
        %v1363 = vpop.f32.mrb[0].mxu0
        %v1364 = vadd.f32 %v1250, %v1363
        %v1365 = vpop.f32.mrb[0].mxu0
        %1366 = vmatprep.mubr.bf16.mxu0 %v1313
        %1367 = vmatmul.mubr.bf16.gmra.mrb[0].mxu0 %v1223
        %v1368 = vpop.f32.mrb[0].mxu0
        %v1369 = vadd.f32 %v1250, %v1368
        %v1370 = vpop.f32.mrb[0].mxu0
        %v1371 = vpop.f32.mrb[0].mxu0
        %v1372 = vadd.f32 %v1250, %v1371
        %v1373 = vpop.f32.mrb[0].mxu0
        %1374 = vmatprep.mubr.bf16.mxu0 %v1316
        %1375 = vmatmul.mubr.bf16.gmra.mrb[0].mxu0 %v1225
        %v1376 = vpop.f32.mrb[0].mxu0
        %v1377 = vadd.f32 %v1250, %v1376
        %v1378 = vpop.f32.mrb[0].mxu0
        %v1379 = vpop.f32.mrb[0].mxu0
        %v1380 = vadd.f32 %v1250, %v1379
        %v1381 = vpop.f32.mrb[0].mxu0
        %1382 = vdwg.mxu0
        %v1383 = vmax.f32 %v1353, 0.0
        %v1384 = vmax.f32 %v1356, 0.0
        %v1385 = vmax.f32 %v1361, 0.0
        %v1386 = vmax.f32 %v1364, 0.0
        %v1387 = vmax.f32 %v1369, 0.0
        %v1388 = vmax.f32 %v1372, 0.0
        %v1389 = vmax.f32 %v1377, 0.0
        %v1390 = vmax.f32 %v1380, 0.0
        %v1391 = vpack.c.bf16 %v1384, %v1383
        %v1392 = vpack.c.bf16 %v1386, %v1385
        %v1393 = vpack.c.bf16 %v1388, %v1387
        %v1394 = vpack.c.bf16 %v1390, %v1389
        %v1395 = vld [vmem:[%s6] sm:$0xf]
        %v1396 = vld [vmem:[%s6 + $0x4] sm:$0xf]
        %v1397 = vld [vmem:[%s7] sm:$0x1]
        %v1399 = vlaneseq
        %v1400 = vshrl.u32 %v1399, 7
        %v1401 = vsub.s32 0, %v1400
        %v1402 = vrot.slane %v1397, %v1401
        %v1406 = vunpack.c.l.b16 %v1395
        %v1407 = vunpack.c.l.b16 %v1396
        %v1408 = vpack.c.b16 %v1407, %v1406
        %v1411 = vsel %vm1157, %v1391, 0
        %v1414 = vsel %vm1157, %v1392, 0
        %v1417 = vsel %vm1157, %v1393, 0
        %v1420 = vsel %vm1157, %v1394, 0
        %1422 = vmatprep.subr.bf16.mxu0 0
        %1423 = vmatpush1.bf16.msra.mxu0 %v1408
        %1424 = vmatprep.subr.bf16.mxu0 0
        %1425 = vmatpush1.bf16.msra.mxu0 0
        %1426 = vmatprep.subr.bf16.mxu0 0
        %1427 = vmatpush1.bf16.msra.mxu0 0
        %1428 = vmatprep.subr.bf16.mxu0 0
        %1429 = vmatpush1.bf16.msra.mxu0 0
        %1430 = vmatprep.subr.bf16.mxu0 0
        %1431 = vmatpush1.bf16.msra.mxu0 0
        %1432 = vmatprep.subr.bf16.mxu0 0
        %1433 = vmatpush1.bf16.msra.mxu0 0
        %1434 = vmatprep.subr.bf16.mxu0 0
        %1435 = vmatpush1.bf16.msra.mxu0 0
        %1436 = vmatprep.subr.bf16.mxu0 0
        %1437 = vmatpush1.bf16.msra.mxu0 0
        %1438 = vmatprep.subr.bf16.mxu0 0
        %1439 = vmatpush1.bf16.msra.mxu0 0
        %1440 = vmatprep.subr.bf16.mxu0 0
        %1441 = vmatpush1.bf16.msra.mxu0 0
        %1442 = vmatprep.subr.bf16.mxu0 0
        %1443 = vmatpush1.bf16.msra.mxu0 0
        %1444 = vmatprep.subr.bf16.mxu0 0
        %1445 = vmatpush1.bf16.msra.mxu0 0
        %1446 = vmatprep.subr.bf16.mxu0 0
        %1447 = vmatpush1.bf16.msra.mxu0 0
        %1448 = vmatprep.subr.bf16.mxu0 0
        %1449 = vmatpush1.bf16.msra.mxu0 0
        %1450 = vmatprep.subr.bf16.mxu0 0
        %1451 = vmatpush1.bf16.msra.mxu0 0
        %1452 = vmatprep.subr.bf16.mxu0 0
        %1453 = vmatpush1.bf16.msra.mxu0 0
        %1454 = vmatprep.mubr.bf16.mxu0 0
        %1455 = vmatmul.mubr.bf16.gmra.mrb[0].mxu0 %v1411
        %v1456 = vpop.f32.mrb[0].mxu0
        %v1457 = vadd.f32 %v1402, %v1456
        %v1458 = vpop.f32.mrb[0].mxu0
        %v1459 = vpop.f32.mrb[0].mxu0
        %v1460 = vadd.f32 %v1402, %v1459
        %v1461 = vpop.f32.mrb[0].mxu0
        %1462 = vmatprep.mubr.bf16.mxu0 0
        %1463 = vmatmul.mubr.bf16.gmra.mrb[0].mxu0 %v1414
        %v1464 = vpop.f32.mrb[0].mxu0
        %v1465 = vadd.f32 %v1402, %v1464
        %v1466 = vpop.f32.mrb[0].mxu0
        %v1467 = vpop.f32.mrb[0].mxu0
        %v1468 = vadd.f32 %v1402, %v1467
        %v1469 = vpop.f32.mrb[0].mxu0
        %1470 = vmatprep.mubr.bf16.mxu0 0
        %1471 = vmatmul.mubr.bf16.gmra.mrb[0].mxu0 %v1417
        %v1472 = vpop.f32.mrb[0].mxu0
        %v1473 = vadd.f32 %v1402, %v1472
        %v1474 = vpop.f32.mrb[0].mxu0
        %v1475 = vpop.f32.mrb[0].mxu0
        %v1476 = vadd.f32 %v1402, %v1475
        %v1477 = vpop.f32.mrb[0].mxu0
        %1478 = vmatprep.mubr.bf16.mxu0 0
        %1479 = vmatmul.mubr.bf16.gmra.mrb[0].mxu0 %v1420
        %v1480 = vpop.f32.mrb[0].mxu0
        %v1481 = vadd.f32 %v1402, %v1480
        %v1482 = vpop.f32.mrb[0].mxu0
        %v1483 = vpop.f32.mrb[0].mxu0
        %v1484 = vadd.f32 %v1402, %v1483
        %v1485 = vpop.f32.mrb[0].mxu0
        %1486 = vdwg.mxu0
        %v1487 = vunpack.c.l.bf16 %v305
        %v1488 = vunpack.c.l.bf16 %v306
        %v1489 = vunpack.c.l.bf16 %v307
        %v1490 = vunpack.c.l.bf16 %v308
        %v1491 = vunpack.c.l.bf16 %v309
        %v1492 = vunpack.c.l.bf16 %v310
        %v1493 = vunpack.c.l.bf16 %v311
        %v1494 = vunpack.c.l.bf16 %v312
        %v1495 = vadd.f32 %v1457, %v1487
        %v1496 = vadd.f32 %v1460, %v1488
        %v1497 = vadd.f32 %v1465, %v1489
        %v1498 = vadd.f32 %v1468, %v1490
        %v1499 = vadd.f32 %v1473, %v1491
        %v1500 = vadd.f32 %v1476, %v1492
        %v1501 = vadd.f32 %v1481, %v1493
        %v1502 = vadd.f32 %v1484, %v1494
        %v1503 = vmax.f32 %v1495, 0.0
        %v1504 = vmax.f32 %v1496, 0.0
        %v1505 = vmax.f32 %v1497, 0.0
        %v1506 = vmax.f32 %v1498, 0.0
        %v1507 = vmax.f32 %v1499, 0.0
        %v1508 = vmax.f32 %v1500, 0.0
        %v1509 = vmax.f32 %v1501, 0.0
        %v1510 = vmax.f32 %v1502, 0.0
        %1511 = vst.msk [vmem:[%s298] sm:$0xff] %vm356, %v1503
        %1512 = vst.msk [vmem:[%s298 + $0x8] sm:$0xff] %vm356, %v1504
        %1513 = vst.msk [vmem:[%s298 + $0x10] sm:$0xff] %vm356, %v1505
        %1514 = vst.msk [vmem:[%s298 + $0x18] sm:$0xff] %vm356, %v1506
        %1515 = vst.msk [vmem:[%s298 + $0x20] sm:$0xff] %vm356, %v1507
        %1516 = vst.msk [vmem:[%s298 + $0x28] sm:$0xff] %vm356, %v1508
        %1517 = vst.msk [vmem:[%s298 + $0x30] sm:$0xff] %vm356, %v1509
        %1518 = vst.msk [vmem:[%s298 + $0x38] sm:$0xff] %vm356, %v1510
        %s1519 = sand.u32 %s203, 1
        %s1520 = scalar_lea.sflag [#allocation3], %s1519
        %s1521 = sand.u32 %s203, 1
        %s1522 = smul.addr %s1521, 64
        %s1523 = scalar_lea.vmem [#allocation2], %s1522
        // Predicated region
        $region53: #{bottleneck_forward.1} parent=51 // pred_check
          %p1524 = pneg %p213
        $region54: #{bottleneck_forward.1} parent=51 // pred_check_branch
          %1526 = sbr.rel (%p1524) target = $region56
        $region55: #{bottleneck_forward.1} parent=51 // pred_region
          %s1528 = ssub.s32 1024, 1024
          %1529 = vsyncadd %s1520, %s1528
          %s1530 = smul.addr %s22, 8
          %s1531 = smul.addr %s1530, 128
          %s1532 = scalar_lea.hbm %s8, %s1531
          %s1533 = sshll.u32 %s1523, 4
          %s1534 = int_to_ptr.vmem [resolvable:$true] %s1533
          %1539 = dma.vmem_to_hbm [thread:$0]  %s1534, 1024, %s1532, %s1520, 128, 128, 8
        $region56: #{bottleneck_forward.1} parent=51 // pred_fallthru
          _
      $region52: #{bottleneck_forward.1} parent=5 // pred_fallthru
        _
      %p1540 = scmp.le.s32.totalorder 2, %s17
      // Predicated region
      $region57: #{bottleneck_forward.1} parent=5 // pred_check
        %p1541 = pneg %p1540
      $region58: #{bottleneck_forward.1} parent=5 // pred_check_branch
        %1543 = sbr.rel (%p1541) target = $region60
      $region59: #{bottleneck_forward.1} parent=5 // pred_region
        %s1544 = ssub.s32 %s17, 2
        // Predicated region
        $region61: #{bottleneck_forward.1} parent=59 // pred_check
          %p1545 = pneg %p219
        $region62: #{bottleneck_forward.1} parent=59 // pred_check_branch
          %1547 = sbr.rel (%p1545) target = $region64
        $region63: #{bottleneck_forward.1} parent=59 // pred_region
          %s1548 = sand.u32 %s204, 1
          %s1549 = scalar_lea.sflag [#allocation3], %s1548
          %s1550 = sand.u32 %s204, 1
          %s1551 = smul.addr %s1550, 64
          %s1552 = scalar_lea.vmem [#allocation2], %s1551
          %1553 = dma.done %s1549, 1024
        $region64: #{bottleneck_forward.1} parent=59 // pred_fallthru
          _
      $region60: #{bottleneck_forward.1} parent=5 // pred_fallthru
        _
    $region6: #{bottleneck_forward.1} parent=1 // loop_footer
      %s21 = sadd.s32 1, %s17
    $region7: #{bottleneck_forward.1} parent=1 // loop_footer_branch
      %16 = sbr.rel target = $region3
    $region8: #{bottleneck_forward.1} parent=1 // loop_exit
      _
    %1554 = vsyncpa [#allocation3], 1
    %s1555 = scalar_lea.sflag [#allocation3], 1
    %1556 = vsyncpa %s1555, 1

</llo_original>
